<compile_context>
chip_gen: v5e
topology: v5e:2x2
jax: 0.10.0
libtpu: 0.0.40
codegen_flags: <defaults>
</compile_context>

<pallas_src>
import functools

import jax
import jax.numpy as jnp
from jax.experimental import pallas as pl
from jax.experimental.pallas import tpu as pltpu


def _pad_up(x, m):
    return ((x + m - 1) // m) * m


def _vmem_plan():
    """Generation-aware scoped-VMEM request and tile-footprint budget."""
    try:
        phys = int(pltpu.get_tpu_info().vmem_capacity_bytes)
    except Exception:
        phys = 64 * 1024 * 1024                      # conservative (v7x-sized) fallback
    if phys >= 100 * 1024 * 1024:                    # v5e / v6e: 128 MiB physical VMEM
        return 64 * 1024 * 1024, 48 * 1024 * 1024
    return 48 * 1024 * 1024, 36 * 1024 * 1024        # v7x: 64 MiB physical VMEM


_VMEM_LIMIT, _TILE_BUDGET = _vmem_plan()


def _pick_tile_hw(HW, N, Kp, Cp, normalize):
    """Largest hw-row tile (multiple of 16) whose double-buffered footprint
    fits the budget for BOTH the GEMM kernel and the LayerNorm kernel."""
    cbytes = 2 if normalize else 4                   # conv intermediate bf16 on LN path

    def footprint(t):
        gemm = (2 * t * Kp * 2                       # bf16 patch tile (double buffered)
                + 2 * Kp * Cp * 2                    # resident bf16 weight (2 pipeline bufs)
                + 2 * t * 4                          # msum column
                + 2 * t * Cp * cbytes                # conv output tile
                + 2 * t * 128 * 4)                   # aux (um + LN partial stats) tile
        ln = 0
        if normalize:
            ln = (2 * t * Cp * 2                     # bf16 conv read-back
                  + 4 * t * 4                        # mu / rinv rows
                  + 2 * t * Cp * 4 * 2               # gamma + beta (single hw-indexed copy)
                  + 2 * t * Cp * 4)                  # f32 output tile
        return max(gemm, ln)

    t = min(512, _pad_up(max(HW, 16), 16))
    while t > 16 and footprint(t) > _TILE_BUDGET:
        t = _pad_up(t // 2, 16)
    # keep >=2 total grid steps so v7x's second TensorCore has work
    if N * ((HW + t - 1) // t) < 2 and HW > 16:
        t = _pad_up((HW + 1) // 2, 16)
    return t


# ----------------------------------------------------------------------------
# Kernel A: bf16 GEMM (full-K, full-Cout resident weight) with fused
#           partial-conv mask handling (+ optional fused ReLU) and
#           per-row LayerNorm partial statistics / update_mask aux output.
# ----------------------------------------------------------------------------
def _pconv_kernel(p_ref, w_ref, ms_ref, o_ref, s_ref, *, winsize, normalize):
    acc = jnp.dot(p_ref[0], w_ref[...], preferred_element_type=jnp.float32)  # (t, Cp)
    msum = ms_ref[0]                                 # (t, 1) exact valid-pixel count
    um = jnp.clip(msum, 0.0, 1.0)                    # torch.clamp(update_mask, 0, 1)
    ratio = (winsize / (msum + 1e-8)) * um           # slide_winsize/(raw+1e-8)*clamped
    y = acc * ratio                                  # bias is None
    if not normalize:
        y = jnp.maximum(y, 0.0)                      # fused ReLU (no second pass)
    o_ref[0] = y.astype(o_ref.dtype)
    lane = jax.lax.broadcasted_iota(jnp.int32, s_ref.shape[1:], 1)
    if normalize:
        rs = jnp.sum(y, axis=1, keepdims=True)       # per-row partial sums for LN
        rq = jnp.sum(y * y, axis=1, keepdims=True)   # (padded channels are exactly 0)
        s_ref[0] = jnp.where(lane == 0, um,
                   jnp.where(lane == 1, rs,
                   jnp.where(lane == 2, rq, 0.0)))
    else:
        s_ref[0] = jnp.where(lane == 0, um, 0.0)


def _pconv_pallas(patches, w, msum, tile_hw, winsize, normalize):
    N, HWp, Kp = patches.shape
    _, Cp = w.shape
    conv_dtype = jnp.bfloat16 if normalize else jnp.float32
    return pl.pallas_call(
        functools.partial(_pconv_kernel, winsize=winsize, normalize=normalize),
        out_shape=(jax.ShapeDtypeStruct((N, HWp, Cp), conv_dtype),
                   jax.ShapeDtypeStruct((N, HWp, 128), jnp.float32)),
        grid_spec=pltpu.PrefetchScalarGridSpec(
            num_scalar_prefetch=0,
            grid=(N, HWp // tile_hw),
            in_specs=[pl.BlockSpec((1, tile_hw, Kp), lambda n, t: (n, t, 0)),
                      pl.BlockSpec((Kp, Cp), lambda n, t: (0, 0)),    # resident weight
                      pl.BlockSpec((1, tile_hw, 1), lambda n, t: (n, t, 0))],
            out_specs=(pl.BlockSpec((1, tile_hw, Cp), lambda n, t: (n, t, 0)),
                       pl.BlockSpec((1, tile_hw, 128), lambda n, t: (n, t, 0)))),
        compiler_params=pltpu.CompilerParams(
            dimension_semantics=("parallel", "parallel"),
            vmem_limit_bytes=_VMEM_LIMIT),
    )(patches, w, msum)


# ----------------------------------------------------------------------------
# Kernel B: fused LayerNorm normalization + affine + ReLU (normalize=True only)
# ----------------------------------------------------------------------------
def _ln_relu_kernel(x_ref, mu_ref, ri_ref, g_ref, b_ref, o_ref):
    x = x_ref[0].astype(jnp.float32)                 # (t, Cp) bf16 conv read-back
    y = (x - mu_ref[0]) * ri_ref[0] * g_ref[...] + b_ref[...]
    o_ref[0] = jnp.maximum(y, 0.0)


def _ln_relu_pallas(x, mu, ri, gamma, beta, tile_hw):
    N, HWp, Cp = x.shape
    # hw-tile outer / sample inner: gamma & beta block index is constant across
    # consecutive steps, so the pipeline skips their re-fetch (read once per core).
    return pl.pallas_call(
        _ln_relu_kernel,
        out_shape=jax.ShapeDtypeStruct((N, HWp, Cp), jnp.float32),
        grid_spec=pltpu.PrefetchScalarGridSpec(
            num_scalar_prefetch=0,
            grid=(HWp // tile_hw, N),
            in_specs=[pl.BlockSpec((1, tile_hw, Cp), lambda t, n: (n, t, 0)),
                      pl.BlockSpec((1, tile_hw, 1), lambda t, n: (n, t, 0)),
                      pl.BlockSpec((1, tile_hw, 1), lambda t, n: (n, t, 0)),
                      pl.BlockSpec((tile_hw, Cp), lambda t, n: (t, 0)),
                      pl.BlockSpec((tile_hw, Cp), lambda t, n: (t, 0))],
            out_specs=pl.BlockSpec((1, tile_hw, Cp), lambda t, n: (n, t, 0))),
        compiler_params=pltpu.CompilerParams(
            dimension_semantics=("parallel", "parallel"),
            vmem_limit_bytes=_VMEM_LIMIT),
    )(x, mu, ri, gamma, beta)


# ----------------------------------------------------------------------------
# Plain-JAX glue: im2col and the block forward
# ----------------------------------------------------------------------------
def _im2col(x, kh, kw, stride, pad):
    """(N, C, H, W) -> (N, Ho*Wo, C*kh*kw); K order matches weight.reshape(Cout, C*kh*kw)."""
    N, C, H, W = x.shape
    xp = jnp.pad(x, ((0, 0), (0, 0), (pad, pad), (pad, pad)))
    Ho = (H + 2 * pad - kh) // stride + 1
    Wo = (W + 2 * pad - kw) // stride + 1
    cols = []
    for i in range(kh):
        for j in range(kw):
            cols.append(xp[:, :, i:i + stride * Ho:stride, j:j + stride * Wo:stride])
    p = jnp.stack(cols, axis=2)                      # (N, C, kh*kw, Ho, Wo)
    p = p.transpose(0, 3, 4, 1, 2).reshape(N, Ho * Wo, C * kh * kw)
    return p, Ho, Wo


def wgan_unet_down_forward(params, x, mask_in):
    """WganUnetDown.forward(x, mask_in) -> (conv, update_mask)."""
    weight = params["weight"]                        # (Cout, Cin, kh, kw), bias-free
    gamma = params.get("ln_gamma")                   # layernormSize == (Cout, Ho, Wo)
    beta = params.get("ln_beta")
    normalize = gamma is not None
    # TODO(synk): layernormSize is assumed to be (out_size, Ho, Wo); other
    # normalized_shape choices would only change the JAX-side stats reduction.

    Cout, Cin, kh, kw = weight.shape
    stride = 2
    pad = {7: 3, 5: 2}.get(kh, 1)                    # matches WganUnetDown.__init__
    N = x.shape[0]
    winsize = float(Cin * kh * kw)                   # slide_winsize (multi_channel)

    # masked-input im2col materialized directly in bf16 (mask is 0/1 -> exact)
    patches, Ho, Wo = _im2col((x * mask_in).astype(jnp.bfloat16), kh, kw, stride, pad)
    # exact ones-weight mask conv = channel sum then window sum, kept in f32
    mpatch, _, _ = _im2col(jnp.sum(mask_in, axis=1, keepdims=True), kh, kw, stride, pad)
    msum = jnp.sum(mpatch, axis=-1, keepdims=True)   # (N, HW, 1)

    HW = Ho * Wo
    K = Cin * kh * kw
    Kp = _pad_up(K, 128)
    Cp = _pad_up(Cout, 128)
    tile_hw = _pick_tile_hw(HW, N, Kp, Cp, normalize)
    HWp = _pad_up(HW, tile_hw)

    p_b = jnp.pad(patches, ((0, 0), (0, HWp - HW), (0, Kp - K)))
    w_b = jnp.pad(weight.reshape(Cout, K).T,
                  ((0, Kp - K), (0, Cp - Cout))).astype(jnp.bfloat16)
    ms_b = jnp.pad(msum, ((0, 0), (0, HWp - HW), (0, 0)))

    conv_p, aux = _pconv_pallas(p_b, w_b, ms_b, tile_hw, winsize, normalize)

    um = aux[:, :HW, 0].reshape(N, 1, Ho, Wo)
    mask_out = jnp.broadcast_to(um, (N, Cout, Ho, Wo))     # identical over out-channels

    if normalize:
        # LayerNorm over (Cout, Ho, Wo) per sample from the fused partial stats.
        # TODO(synk): variance uses E[x^2]-mean^2 in f32 (clamped >=0); a shifted
        # two-pass reduction would be more robust for very-large-mean activations.
        cnt = float(Cout * HW)
        rs = jnp.sum(aux[:, :HW, 1], axis=1)
        rq = jnp.sum(aux[:, :HW, 2], axis=1)
        mean = rs / cnt
        var = jnp.maximum(rq / cnt - mean * mean, 0.0)
        rinv = jax.lax.rsqrt(var + 1e-5)
        mu_rows = jnp.broadcast_to(mean.reshape(N, 1, 1), (N, HWp, 1))
        ri_rows = jnp.broadcast_to(rinv.reshape(N, 1, 1), (N, HWp, 1))
        g2d = jnp.pad(gamma.transpose(1, 2, 0).reshape(HW, Cout),
                      ((0, HWp - HW), (0, Cp - Cout)))      # single copy, hw-indexed
        b2d = jnp.pad(beta.transpose(1, 2, 0).reshape(HW, Cout),
                      ((0, HWp - HW), (0, Cp - Cout)))
        y_p = _ln_relu_pallas(conv_p, mu_rows, ri_rows, g2d, b2d, tile_hw)
        y = y_p[:, :HW, :Cout]
    else:
        y = conv_p[:, :HW, :Cout]                           # ReLU already fused

    out = y.reshape(N, Ho, Wo, Cout).transpose(0, 3, 1, 2)
    return out, mask_out


if __name__ == "__main__":
    key = jax.random.PRNGKey(0)
    k_w, k_g, k_b, k_x, k_m = jax.random.split(key, 5)

    # small WganUnetDown: in=4, out=32, kernels=5 (stride 2, pad 2), 16x16 -> 8x8
    N, Cin, H, W = 2, 4, 16, 16
    Cout, ksz = 32, 5
    Ho = Wo = H // 2

    params = {
        "weight": jax.random.normal(k_w, (Cout, Cin, ksz, ksz), jnp.float32)
                  * (1.0 / (Cin * ksz * ksz)) ** 0.5,
        "ln_gamma": 1.0 + 0.1 * jax.random.normal(k_g, (Cout, Ho, Wo), jnp.float32),
        "ln_beta": 0.1 * jax.random.normal(k_b, (Cout, Ho, Wo), jnp.float32),
    }
    x = jax.random.normal(k_x, (N, Cin, H, W), jnp.float32)
    hole = (jax.random.uniform(k_m, (N, 1, H, W)) > 0.25).astype(jnp.float32)
    mask = jnp.broadcast_to(hole, (N, Cin, H, W))            # 1 = valid, 0 = hole

    fwd = jax.jit(wgan_unet_down_forward)
    out, mask_out = fwd(params, x, mask)
    jax.block_until_ready((out, mask_out))
    assert out.shape == (N, Cout, Ho, Wo) and out.dtype == jnp.float32
    assert mask_out.shape == (N, Cout, Ho, Wo)
    assert bool(jnp.all(jnp.isfinite(out)))
    assert bool(jnp.all(out >= 0.0))                         # ReLU applied

    # normalize=False path (ReLU fused into the GEMM epilogue, no LN kernel)
    params_nonorm = {"weight": params["weight"]}
    out2, mask_out2 = jax.jit(wgan_unet_down_forward)(params_nonorm, x, mask)
    jax.block_until_ready((out2, mask_out2))
    assert out2.shape == (N, Cout, Ho, Wo)
    assert bool(jnp.all(jnp.isfinite(out2)))
    assert bool(jnp.all(out2 >= 0.0))

    print("KERNEL_OK")
</pallas_src>

<mosaic_0001>
module attributes {stable_mosaic.version = 11 : i64} {
  func.func @_pconv_kernel(%arg0: i32, %arg1: i32, %arg2: memref<1x64x128xbf16, #tpu.memory_space<vmem>>, %arg3: memref<128x128xbf16, #tpu.memory_space<vmem>>, %arg4: memref<1x64x1xf32, #tpu.memory_space<vmem>>, %arg5: memref<1x64x128xbf16, #tpu.memory_space<vmem>>, %arg6: memref<1x64x128xf32, #tpu.memory_space<vmem>>) attributes {dimension_semantics = [#tpu.dimension_semantics<parallel>, #tpu.dimension_semantics<parallel>], iteration_bounds = array<i64: 2, 1>, scalar_prefetch = 0 : i64, scratch_operands = 0 : i64, tpu.core_type = #tpu.core_type<tc>, window_params = [{transform_indices = @transform_0, window_bounds = array<i64: 1, 64, 128>}, {pipeline_mode = #tpu.pipeline_mode<synchronous>, transform_indices = @transform_1, window_bounds = array<i64: 128, 128>}, {transform_indices = @transform_2, window_bounds = array<i64: 1, 64, 1>}, {transform_indices = @transform_3, window_bounds = array<i64: 1, 64, 128>}, {transform_indices = @transform_4, window_bounds = array<i64: 1, 64, 128>}]} {
    %c0 = arith.constant 0 : index
    %c0_0 = arith.constant 0 : index
    %c0_1 = arith.constant 0 : index
    %0 = vector.load %arg2[%c0, %c0_0, %c0_1] : memref<1x64x128xbf16, #tpu.memory_space<vmem>>, vector<1x64x128xbf16>
    %1 = vector.shape_cast %0 : vector<1x64x128xbf16> to vector<64x128xbf16>
    %c0_2 = arith.constant 0 : index
    %c0_3 = arith.constant 0 : index
    %2 = vector.load %arg3[%c0_2, %c0_3] : memref<128x128xbf16, #tpu.memory_space<vmem>>, vector<128x128xbf16>
    %cst = arith.constant dense<0.000000e+00> : vector<64x128xf32>
    %3 = tpu.matmul %1, %2, %cst {dimension_numbers = #tpu.dot_dimension_numbers<[1], [0], [0], [1], [0, 0, 1, 1], [], []>} : vector<64x128xbf16>, vector<128x128xbf16>, vector<64x128xf32> -> vector<64x128xf32>
    %c0_4 = arith.constant 0 : index
    %c0_5 = arith.constant 0 : index
    %c0_6 = arith.constant 0 : index
    %4 = vector.load %arg4[%c0_4, %c0_5, %c0_6] : memref<1x64x1xf32, #tpu.memory_space<vmem>>, vector<1x64x1xf32>
    %5 = vector.shape_cast %4 : vector<1x64x1xf32> to vector<64x1xf32>
    %cst_7 = arith.constant 0.000000e+00 : f32
    %cst_8 = arith.constant 1.000000e+00 : f32
    %6 = vector.broadcast %cst_7 : f32 to vector<64x1xf32>
    %7 = arith.maximumf %6, %5 : vector<64x1xf32>
    %8 = vector.broadcast %cst_8 : f32 to vector<64x1xf32>
    %9 = arith.minimumf %8, %7 : vector<64x1xf32>
    %cst_9 = arith.constant 9.99999993E-9 : f32
    %10 = vector.broadcast %cst_9 : f32 to vector<64x1xf32>
    %11 = arith.addf %5, %10 : vector<64x1xf32>
    %cst_10 = arith.constant 1.000000e+02 : f32
    %12 = vector.broadcast %cst_10 : f32 to vector<64x1xf32>
    %13 = arith.divf %12, %11 : vector<64x1xf32>
    %14 = arith.mulf %13, %9 : vector<64x1xf32>
    %15 = vector.broadcast %14 : vector<64x1xf32> to vector<64x128xf32>
    %16 = arith.mulf %3, %15 : vector<64x128xf32>
    %17 = arith.truncf %16 : vector<64x128xf32> to vector<64x128xbf16>
    %c0_11 = arith.constant 0 : index
    %c0_12 = arith.constant 0 : index
    %c0_13 = arith.constant 0 : index
    %18 = vector.load %arg5[%c0_11, %c0_12, %c0_13] : memref<1x64x128xbf16, #tpu.memory_space<vmem>>, vector<1x64x128xbf16>
    %19 = vector.shape_cast %18 : vector<1x64x128xbf16> to vector<64x128xbf16>
    %20 = vector.shape_cast %17 : vector<64x128xbf16> to vector<1x64x128xbf16>
    tpu.vector_store %arg5[%c0_11, %c0_12, %c0_13], %20 {strides = array<i32>} : memref<1x64x128xbf16, #tpu.memory_space<vmem>>, vector<1x64x128xbf16>,
    %21 = tpu.iota {dimensions = array<i32: 1>} : vector<64x128xi32>
    %cst_14 = arith.constant dense<0.000000e+00> : vector<64xf32>
    %22 = vector.multi_reduction <add>, %16, %cst_14 [1] : vector<64x128xf32> to vector<64xf32>
    %23 = vector.shape_cast %22 : vector<64xf32> to vector<64x1xf32>
    %24 = arith.mulf %16, %16 : vector<64x128xf32>
    %cst_15 = arith.constant dense<0.000000e+00> : vector<64xf32>
    %25 = vector.multi_reduction <add>, %24, %cst_15 [1] : vector<64x128xf32> to vector<64xf32>
    %26 = vector.shape_cast %25 : vector<64xf32> to vector<64x1xf32>
    %c0_i32 = arith.constant 0 : i32
    %27 = vector.broadcast %c0_i32 : i32 to vector<64x128xi32>
    %28 = arith.cmpi eq, %21, %27 : vector<64x128xi32>
    %c1_i32 = arith.constant 1 : i32
    %29 = vector.broadcast %c1_i32 : i32 to vector<64x128xi32>
    %30 = arith.cmpi eq, %21, %29 : vector<64x128xi32>
    %c2_i32 = arith.constant 2 : i32
    %31 = vector.broadcast %c2_i32 : i32 to vector<64x128xi32>
    %32 = arith.cmpi eq, %21, %31 : vector<64x128xi32>
    %cst_16 = arith.constant 0.000000e+00 : f32
    %33 = vector.shape_cast %26 : vector<64x1xf32> to vector<64x1xf32>
    %34 = vector.broadcast %33 : vector<64x1xf32> to vector<64x128xf32>
    %35 = vector.broadcast %cst_16 : f32 to vector<64x128xf32>
    %36 = arith.select %32, %34, %35 : vector<64x128xi1>, vector<64x128xf32>
    %37 = vector.shape_cast %23 : vector<64x1xf32> to vector<64x1xf32>
    %38 = vector.broadcast %37 : vector<64x1xf32> to vector<64x128xf32>
    %39 = arith.select %30, %38, %36 : vector<64x128xi1>, vector<64x128xf32>
    %40 = vector.shape_cast %9 : vector<64x1xf32> to vector<64x1xf32>
    %41 = vector.broadcast %40 : vector<64x1xf32> to vector<64x128xf32>
    %42 = arith.select %28, %41, %39 : vector<64x128xi1>, vector<64x128xf32>
    %c0_17 = arith.constant 0 : index
    %c0_18 = arith.constant 0 : index
    %c0_19 = arith.constant 0 : index
    %43 = vector.load %arg6[%c0_17, %c0_18, %c0_19] : memref<1x64x128xf32, #tpu.memory_space<vmem>>, vector<1x64x128xf32>
    %44 = vector.shape_cast %43 : vector<1x64x128xf32> to vector<64x128xf32>
    %45 = vector.shape_cast %42 : vector<64x128xf32> to vector<1x64x128xf32>
    tpu.vector_store %arg6[%c0_17, %c0_18, %c0_19], %45 {strides = array<i32>} : memref<1x64x128xf32, #tpu.memory_space<vmem>>, vector<1x64x128xf32>,
    return
  }
  func.func @transform_0(%arg0: i32, %arg1: i32) -> (i32, i32, i32) {
    %c0_i32 = arith.constant 0 : i32
    %c0_i32_0 = arith.constant 0 : i32
    return %arg0, %arg1, %c0_i32 : i32, i32, i32
  }
  func.func @transform_1(%arg0: i32, %arg1: i32) -> (i32, i32) {
    %c0_i32 = arith.constant 0 : i32
    %c0_i32_0 = arith.constant 0 : i32
    %c0_i32_1 = arith.constant 0 : i32
    return %c0_i32, %c0_i32_0 : i32, i32
  }
  func.func @transform_2(%arg0: i32, %arg1: i32) -> (i32, i32, i32) {
    %c0_i32 = arith.constant 0 : i32
    %c0_i32_0 = arith.constant 0 : i32
    return %arg0, %arg1, %c0_i32 : i32, i32, i32
  }
  func.func @transform_3(%arg0: i32, %arg1: i32) -> (i32, i32, i32) {
    %c0_i32 = arith.constant 0 : i32
    %c0_i32_0 = arith.constant 0 : i32
    return %arg0, %arg1, %c0_i32 : i32, i32, i32
  }
  func.func @transform_4(%arg0: i32, %arg1: i32) -> (i32, i32, i32) {
    %c0_i32 = arith.constant 0 : i32
    %c0_i32_0 = arith.constant 0 : i32
    return %arg0, %arg1, %c0_i32 : i32, i32, i32
  }
}

module attributes {stable_mosaic.version = 11 : i64} {
  func.func @_ln_relu_kernel(%arg0: i32, %arg1: i32, %arg2: memref<1x64x128xbf16, #tpu.memory_space<vmem>>, %arg3: memref<1x64x1xf32, #tpu.memory_space<vmem>>, %arg4: memref<1x64x1xf32, #tpu.memory_space<vmem>>, %arg5: memref<64x128xf32, #tpu.memory_space<vmem>>, %arg6: memref<64x128xf32, #tpu.memory_space<vmem>>, %arg7: memref<1x64x128xf32, #tpu.memory_space<vmem>>) attributes {dimension_semantics = [#tpu.dimension_semantics<parallel>, #tpu.dimension_semantics<parallel>], iteration_bounds = array<i64: 1, 2>, scalar_prefetch = 0 : i64, scratch_operands = 0 : i64, tpu.core_type = #tpu.core_type<tc>, window_params = [{transform_indices = @transform_0, window_bounds = array<i64: 1, 64, 128>}, {transform_indices = @transform_1, window_bounds = array<i64: 1, 64, 1>}, {transform_indices = @transform_2, window_bounds = array<i64: 1, 64, 1>}, {transform_indices = @transform_3, window_bounds = array<i64: 64, 128>}, {transform_indices = @transform_4, window_bounds = array<i64: 64, 128>}, {transform_indices = @transform_5, window_bounds = array<i64: 1, 64, 128>}]} {
    %c0 = arith.constant 0 : index
    %c0_0 = arith.constant 0 : index
    %c0_1 = arith.constant 0 : index
    %0 = vector.load %arg2[%c0, %c0_0, %c0_1] : memref<1x64x128xbf16, #tpu.memory_space<vmem>>, vector<1x64x128xbf16>
    %1 = vector.shape_cast %0 : vector<1x64x128xbf16> to vector<64x128xbf16>
    %2 = arith.extf %1 : vector<64x128xbf16> to vector<64x128xf32>
    %c0_2 = arith.constant 0 : index
    %c0_3 = arith.constant 0 : index
    %c0_4 = arith.constant 0 : index
    %3 = vector.load %arg3[%c0_2, %c0_3, %c0_4] : memref<1x64x1xf32, #tpu.memory_space<vmem>>, vector<1x64x1xf32>
    %4 = vector.shape_cast %3 : vector<1x64x1xf32> to vector<64x1xf32>
    %5 = vector.broadcast %4 : vector<64x1xf32> to vector<64x128xf32>
    %6 = arith.subf %2, %5 : vector<64x128xf32>
    %c0_5 = arith.constant 0 : index
    %c0_6 = arith.constant 0 : index
    %c0_7 = arith.constant 0 : index
    %7 = vector.load %arg4[%c0_5, %c0_6, %c0_7] : memref<1x64x1xf32, #tpu.memory_space<vmem>>, vector<1x64x1xf32>
    %8 = vector.shape_cast %7 : vector<1x64x1xf32> to vector<64x1xf32>
    %9 = vector.broadcast %8 : vector<64x1xf32> to vector<64x128xf32>
    %10 = arith.mulf %6, %9 : vector<64x128xf32>
    %c0_8 = arith.constant 0 : index
    %c0_9 = arith.constant 0 : index
    %11 = vector.load %arg5[%c0_8, %c0_9] : memref<64x128xf32, #tpu.memory_space<vmem>>, vector<64x128xf32>
    %12 = arith.mulf %10, %11 : vector<64x128xf32>
    %c0_10 = arith.constant 0 : index
    %c0_11 = arith.constant 0 : index
    %13 = vector.load %arg6[%c0_10, %c0_11] : memref<64x128xf32, #tpu.memory_space<vmem>>, vector<64x128xf32>
    %14 = arith.addf %12, %13 : vector<64x128xf32>
    %cst = arith.constant 0.000000e+00 : f32
    %15 = vector.broadcast %cst : f32 to vector<64x128xf32>
    %16 = arith.maximumf %14, %15 : vector<64x128xf32>
    %c0_12 = arith.constant 0 : index
    %c0_13 = arith.constant 0 : index
    %c0_14 = arith.constant 0 : index
    %17 = vector.load %arg7[%c0_12, %c0_13, %c0_14] : memref<1x64x128xf32, #tpu.memory_space<vmem>>, vector<1x64x128xf32>
    %18 = vector.shape_cast %17 : vector<1x64x128xf32> to vector<64x128xf32>
    %19 = vector.shape_cast %16 : vector<64x128xf32> to vector<1x64x128xf32>
    tpu.vector_store %arg7[%c0_12, %c0_13, %c0_14], %19 {strides = array<i32>} : memref<1x64x128xf32, #tpu.memory_space<vmem>>, vector<1x64x128xf32>,
    return
  }
  func.func @transform_0(%arg0: i32, %arg1: i32) -> (i32, i32, i32) {
    %c0_i32 = arith.constant 0 : i32
    %c0_i32_0 = arith.constant 0 : i32
    return %arg1, %arg0, %c0_i32 : i32, i32, i32
  }
  func.func @transform_1(%arg0: i32, %arg1: i32) -> (i32, i32, i32) {
    %c0_i32 = arith.constant 0 : i32
    %c0_i32_0 = arith.constant 0 : i32
    return %arg1, %arg0, %c0_i32 : i32, i32, i32
  }
  func.func @transform_2(%arg0: i32, %arg1: i32) -> (i32, i32, i32) {
    %c0_i32 = arith.constant 0 : i32
    %c0_i32_0 = arith.constant 0 : i32
    return %arg1, %arg0, %c0_i32 : i32, i32, i32
  }
  func.func @transform_3(%arg0: i32, %arg1: i32) -> (i32, i32) {
    %c0_i32 = arith.constant 0 : i32
    %c0_i32_0 = arith.constant 0 : i32
    return %arg0, %c0_i32 : i32, i32
  }
  func.func @transform_4(%arg0: i32, %arg1: i32) -> (i32, i32) {
    %c0_i32 = arith.constant 0 : i32
    %c0_i32_0 = arith.constant 0 : i32
    return %arg0, %c0_i32 : i32, i32
  }
  func.func @transform_5(%arg0: i32, %arg1: i32) -> (i32, i32, i32) {
    %c0_i32 = arith.constant 0 : i32
    %c0_i32_0 = arith.constant 0 : i32
    return %arg1, %arg0, %c0_i32 : i32, i32, i32
  }
}

</mosaic_0001>

<llo_original>
// kernel: wgan_unet_down_forward.3
$region0: #{wgan_unet_down_forward.3}
  #allocation0 [shape = 'u32[]', space=smem, size = 0x4, offset = 0x4, fixed_abs, tag = 'smem constant byte address 0x4 - core index']
  #allocation1 [shape = 'u32[72,128]{1,0:T(1,128)}', space=vmem, size = 0x9000, scoped, tag = 'internal scratch']
  %s0 = inlined_call_operand.vmem [shape: bf16[2,64,128], index: 0, kind: input, shape index: {}]
  %s1 = inlined_call_operand.vmem [shape: f32[2,64,1], index: 1, kind: input, shape index: {}]
  %s2 = inlined_call_operand.vmem [shape: f32[2,64,1], index: 2, kind: input, shape index: {}]
  %s3 = inlined_call_operand.vmem [shape: f32[64,128], index: 3, kind: input, shape index: {}]
  %s4 = inlined_call_operand.vmem [shape: f32[64,128], index: 4, kind: input, shape index: {}]
  %s5 = inlined_call_operand.vmem [shape: f32[2,64,128], index: 5, kind: output, shape index: {}]
  %s6 = sld [smem:[#allocation0]]
  $region53: #{wgan_unet_down_forward.3} parent=0
    _
  %s8 = ssub.s32 1, %s6
  %s9 = scalar_select 0, %s8, %s6
  loop: start=0, step=1, limit=4
  $region2: #{wgan_unet_down_forward.3} parent=0 // loop_pre_header
    _
  $region3: #{wgan_unet_down_forward.3} parent=0 // loop_header
    %s11 = sphi 0, %s15
    %p12 = scmp.ge.s32.totalorder %s11, 4
    %s18 = sphi 0, %s30
    %s19 = sphi 0, %s26
    %s20 = sphi 0, %s18
    %s21 = sphi 0, %s19
    %s22 = sphi 0, %s20
    %s23 = sphi 0, %s21
    %s35 = sphi 0, %s37
    %s38 = sphi 0, %s35
    %s39 = sphi 0, %s38
    %s55 = sphi 0, %s39
    %s63 = sphi 0, %s65
    %s66 = sphi 0, %s63
    %s67 = sphi 0, %s66
    %s83 = sphi 0, %s67
    %s91 = sphi 0, %s93
    %s94 = sphi 0, %s91
    %s95 = sphi 0, %s94
    %s111 = sphi 0, %s95
    %s117 = sphi 0, %s119
    %s120 = sphi 0, %s117
    %s121 = sphi 0, %s120
    %s137 = sphi 0, %s121
    %s143 = sphi 0, %s145
    %s146 = sphi 0, %s143
    %s147 = sphi 0, %s146
    %s163 = sphi 0, %s147
    %s171 = sphi 0, %s173
    %s174 = sphi 0, %s171
    %s175 = sphi 0, %s174
    %s191 = sphi 0, %s175
  $region4: #{wgan_unet_down_forward.3} parent=0 // loop_header_branch
    %14 = sbr.rel (%p12) target = $region8
  $region5: #{wgan_unet_down_forward.3} parent=0 // loop_body
    %s16 = ssub.s32 %s11, 1
    %s17 = ssub.s32 %s11, 2
    %s24 = sadd.s32 1, %s19
    %p25 = scmp.ge.s32.totalorder %s24, 2
    %s26 = scalar_select %p25, 0, %s24
    %s27 = sadd.s32 1, %s18
    %s28 = scalar_select %p25, %s27, %s18
    %p29 = scmp.ge.s32.totalorder %s28, 1
    %s30 = scalar_select %p29, 0, %s28
    %s31 = ssub.s32 %s19, %s26
    %s32 = ssub.s32 %s18, %s30
    %s33 = sor.u32 %s31, %s32
    %p34 = scmp.eq.s32.totalorder %s33, 0
    %s36 = sadd.s32 %s35, 1
    %s37 = scalar_select %p34, %s35, %s36
    %p40 = pneg %p34
    %p41 = scmp.eq.s32.totalorder %s11, 1
    %p42 = por %p40, %p41
    %p43 = scmp.ne.s32.totalorder %s35, %s38
    %p44 = scmp.eq.s32.totalorder %s11, 0
    %p45 = por %p43, %p44
    %p46 = scmp.ne.s32.totalorder %s35, %s38
    %p47 = scmp.eq.s32.totalorder %s16, 1
    %p48 = por %p46, %p47
    %p49 = scmp.ne.s32.totalorder %s38, %s39
    %p50 = scmp.eq.s32.totalorder %s16, 0
    %p51 = por %p49, %p50
    %p52 = scmp.ne.s32.totalorder %s38, %s39
    %p53 = scmp.eq.s32.totalorder %s17, 1
    %p54 = por %p52, %p53
    %p56 = scmp.ne.s32.totalorder %s39, %s55
    %p57 = scmp.eq.s32.totalorder %s17, 0
    %p58 = por %p56, %p57
    %s59 = ssub.s32 %s19, %s26
    %s60 = ssub.s32 %s18, %s30
    %s61 = sor.u32 %s59, %s60
    %p62 = scmp.eq.s32.totalorder %s61, 0
    %s64 = sadd.s32 %s63, 1
    %s65 = scalar_select %p62, %s63, %s64
    %p68 = pneg %p62
    %p69 = scmp.eq.s32.totalorder %s11, 1
    %p70 = por %p68, %p69
    %p71 = scmp.ne.s32.totalorder %s63, %s66
    %p72 = scmp.eq.s32.totalorder %s11, 0
    %p73 = por %p71, %p72
    %p74 = scmp.ne.s32.totalorder %s63, %s66
    %p75 = scmp.eq.s32.totalorder %s16, 1
    %p76 = por %p74, %p75
    %p77 = scmp.ne.s32.totalorder %s66, %s67
    %p78 = scmp.eq.s32.totalorder %s16, 0
    %p79 = por %p77, %p78
    %p80 = scmp.ne.s32.totalorder %s66, %s67
    %p81 = scmp.eq.s32.totalorder %s17, 1
    %p82 = por %p80, %p81
    %p84 = scmp.ne.s32.totalorder %s67, %s83
    %p85 = scmp.eq.s32.totalorder %s17, 0
    %p86 = por %p84, %p85
    %s87 = ssub.s32 %s19, %s26
    %s88 = ssub.s32 %s18, %s30
    %s89 = sor.u32 %s87, %s88
    %p90 = scmp.eq.s32.totalorder %s89, 0
    %s92 = sadd.s32 %s91, 1
    %s93 = scalar_select %p90, %s91, %s92
    %p96 = pneg %p90
    %p97 = scmp.eq.s32.totalorder %s11, 1
    %p98 = por %p96, %p97
    %p99 = scmp.ne.s32.totalorder %s91, %s94
    %p100 = scmp.eq.s32.totalorder %s11, 0
    %p101 = por %p99, %p100
    %p102 = scmp.ne.s32.totalorder %s91, %s94
    %p103 = scmp.eq.s32.totalorder %s16, 1
    %p104 = por %p102, %p103
    %p105 = scmp.ne.s32.totalorder %s94, %s95
    %p106 = scmp.eq.s32.totalorder %s16, 0
    %p107 = por %p105, %p106
    %p108 = scmp.ne.s32.totalorder %s94, %s95
    %p109 = scmp.eq.s32.totalorder %s17, 1
    %p110 = por %p108, %p109
    %p112 = scmp.ne.s32.totalorder %s95, %s111
    %p113 = scmp.eq.s32.totalorder %s17, 0
    %p114 = por %p112, %p113
    %s115 = ssub.s32 %s18, %s30
    %p116 = scmp.eq.s32.totalorder %s115, 0
    %s118 = sadd.s32 %s117, 1
    %s119 = scalar_select %p116, %s117, %s118
    %p122 = pneg %p116
    %p123 = scmp.eq.s32.totalorder %s11, 1
    %p124 = por %p122, %p123
    %p125 = scmp.ne.s32.totalorder %s117, %s120
    %p126 = scmp.eq.s32.totalorder %s11, 0
    %p127 = por %p125, %p126
    %p128 = scmp.ne.s32.totalorder %s117, %s120
    %p129 = scmp.eq.s32.totalorder %s16, 1
    %p130 = por %p128, %p129
    %p131 = scmp.ne.s32.totalorder %s120, %s121
    %p132 = scmp.eq.s32.totalorder %s16, 0
    %p133 = por %p131, %p132
    %p134 = scmp.ne.s32.totalorder %s120, %s121
    %p135 = scmp.eq.s32.totalorder %s17, 1
    %p136 = por %p134, %p135
    %p138 = scmp.ne.s32.totalorder %s121, %s137
    %p139 = scmp.eq.s32.totalorder %s17, 0
    %p140 = por %p138, %p139
    %s141 = ssub.s32 %s18, %s30
    %p142 = scmp.eq.s32.totalorder %s141, 0
    %s144 = sadd.s32 %s143, 1
    %s145 = scalar_select %p142, %s143, %s144
    %p148 = pneg %p142
    %p149 = scmp.eq.s32.totalorder %s11, 1
    %p150 = por %p148, %p149
    %p151 = scmp.ne.s32.totalorder %s143, %s146
    %p152 = scmp.eq.s32.totalorder %s11, 0
    %p153 = por %p151, %p152
    %p154 = scmp.ne.s32.totalorder %s143, %s146
    %p155 = scmp.eq.s32.totalorder %s16, 1
    %p156 = por %p154, %p155
    %p157 = scmp.ne.s32.totalorder %s146, %s147
    %p158 = scmp.eq.s32.totalorder %s16, 0
    %p159 = por %p157, %p158
    %p160 = scmp.ne.s32.totalorder %s146, %s147
    %p161 = scmp.eq.s32.totalorder %s17, 1
    %p162 = por %p160, %p161
    %p164 = scmp.ne.s32.totalorder %s147, %s163
    %p165 = scmp.eq.s32.totalorder %s17, 0
    %p166 = por %p164, %p165
    %s167 = ssub.s32 %s19, %s26
    %s168 = ssub.s32 %s18, %s30
    %s169 = sor.u32 %s167, %s168
    %p170 = scmp.eq.s32.totalorder %s169, 0
    %s172 = sadd.s32 %s171, 1
    %s173 = scalar_select %p170, %s171, %s172
    %p176 = pneg %p170
    %p177 = scmp.eq.s32.totalorder %s11, 1
    %p178 = por %p176, %p177
    %p179 = scmp.ne.s32.totalorder %s171, %s174
    %p180 = scmp.eq.s32.totalorder %s11, 0
    %p181 = por %p179, %p180
    %p182 = scmp.ne.s32.totalorder %s171, %s174
    %p183 = scmp.eq.s32.totalorder %s16, 1
    %p184 = por %p182, %p183
    %p185 = scmp.ne.s32.totalorder %s174, %s175
    %p186 = scmp.eq.s32.totalorder %s16, 0
    %p187 = por %p185, %p186
    %p188 = scmp.ne.s32.totalorder %s174, %s175
    %p189 = scmp.eq.s32.totalorder %s17, 1
    %p190 = por %p188, %p189
    %p192 = scmp.ne.s32.totalorder %s175, %s191
    %p193 = scmp.eq.s32.totalorder %s17, 0
    %p194 = por %p192, %p193
    %p195 = scmp.le.s32.totalorder 1, %s11
    %p196 = scmp.lt.s32.totalorder %s11, 3
    %p197 = pnand %p195, %p196
    %p198 = pneg %p197
    // Predicated region
    $region9: #{wgan_unet_down_forward.3} parent=5 // pred_check
      _
    $region10: #{wgan_unet_down_forward.3} parent=5 // pred_check_branch
      %200 = sbr.rel (%p197) target = $region12
    $region11: #{wgan_unet_down_forward.3} parent=5 // pred_region
      %s201 = ssub.s32 %s11, 1
      // Predicated region
      $region13: #{wgan_unet_down_forward.3} parent=11 // pred_check
        %p202 = pneg %p133
      $region14: #{wgan_unet_down_forward.3} parent=11 // pred_check_branch
        %204 = sbr.rel (%p202) target = $region16
      $region15: #{wgan_unet_down_forward.3} parent=11 // pred_region
        %s205 = smul.u32 8, %s20
        %p206 = scmp.lt.s32.totalorder %s205, 7
        %s207 = scalar_select %p206, %s205, 7
        %s208 = smul.addr %s207, 8
        %s209 = scalar_lea.vmem %s3, %s208
        %s210 = smul.u32 8, %s20
      $region16: #{wgan_unet_down_forward.3} parent=11 // pred_fallthru
        _
      // Predicated region
      $region17: #{wgan_unet_down_forward.3} parent=11 // pred_check
        %p211 = pneg %p159
      $region18: #{wgan_unet_down_forward.3} parent=11 // pred_check_branch
        %213 = sbr.rel (%p211) target = $region20
      $region19: #{wgan_unet_down_forward.3} parent=11 // pred_region
        %s214 = smul.u32 8, %s20
        %p215 = scmp.lt.s32.totalorder %s214, 7
        %s216 = scalar_select %p215, %s214, 7
        %s217 = smul.addr %s216, 8
        %s218 = scalar_lea.vmem %s4, %s217
        %s219 = smul.u32 8, %s20
      $region20: #{wgan_unet_down_forward.3} parent=11 // pred_fallthru
        _
    $region12: #{wgan_unet_down_forward.3} parent=5 // pred_fallthru
      _
    %p220 = scmp.lt.s32.totalorder %s11, 2
    // Predicated region
    $region21: #{wgan_unet_down_forward.3} parent=5 // pred_check
      %p221 = pneg %p220
    $region22: #{wgan_unet_down_forward.3} parent=5 // pred_check_branch
      %223 = sbr.rel (%p221) target = $region24
    $region23: #{wgan_unet_down_forward.3} parent=5 // pred_region
      // Predicated region
      $region25: #{wgan_unet_down_forward.3} parent=23 // pred_check
        %p224 = pneg %p45
      $region26: #{wgan_unet_down_forward.3} parent=23 // pred_check_branch
        %226 = sbr.rel (%p224) target = $region28
      $region27: #{wgan_unet_down_forward.3} parent=23 // pred_region
        %s227 = smul.u32 8, %s18
        %p228 = scmp.lt.s32.totalorder %s19, 1
        %s229 = scalar_select %p228, %s19, 1
        %p230 = scmp.lt.s32.totalorder %s227, 7
        %s231 = scalar_select %p230, %s227, 7
        %s232 = smul.addr %s229, 8
        %s233 = sadd.s32 %s231, %s232
        %s234 = smul.addr %s233, 4
        %s235 = scalar_lea.vmem %s0, %s234
        %s236 = smul.u32 8, %s18
      $region28: #{wgan_unet_down_forward.3} parent=23 // pred_fallthru
        _
      // Predicated region
      $region29: #{wgan_unet_down_forward.3} parent=23 // pred_check
        %p237 = pneg %p73
      $region30: #{wgan_unet_down_forward.3} parent=23 // pred_check_branch
        %239 = sbr.rel (%p237) target = $region32
      $region31: #{wgan_unet_down_forward.3} parent=23 // pred_region
        %s240 = smul.u32 8, %s18
        %p241 = scmp.lt.s32.totalorder %s19, 1
        %s242 = scalar_select %p241, %s19, 1
        %p243 = scmp.lt.s32.totalorder %s240, 7
        %s244 = scalar_select %p243, %s240, 7
        %s245 = smul.addr %s242, 8
        %s246 = sadd.s32 %s244, %s245
        %s247 = smul.addr %s246, 8
        %s248 = scalar_lea.vmem %s1, %s247
        %s249 = smul.u32 8, %s18
      $region32: #{wgan_unet_down_forward.3} parent=23 // pred_fallthru
        _
      // Predicated region
      $region33: #{wgan_unet_down_forward.3} parent=23 // pred_check
        %p250 = pneg %p101
      $region34: #{wgan_unet_down_forward.3} parent=23 // pred_check_branch
        %252 = sbr.rel (%p250) target = $region36
      $region35: #{wgan_unet_down_forward.3} parent=23 // pred_region
        %s253 = smul.u32 8, %s18
        %p254 = scmp.lt.s32.totalorder %s19, 1
        %s255 = scalar_select %p254, %s19, 1
        %p256 = scmp.lt.s32.totalorder %s253, 7
        %s257 = scalar_select %p256, %s253, 7
        %s258 = smul.addr %s255, 8
        %s259 = sadd.s32 %s257, %s258
        %s260 = smul.addr %s259, 8
        %s261 = scalar_lea.vmem %s2, %s260
        %s262 = smul.u32 8, %s18
      $region36: #{wgan_unet_down_forward.3} parent=23 // pred_fallthru
        _
    $region24: #{wgan_unet_down_forward.3} parent=5 // pred_fallthru
      _
    %p263 = scmp.le.s32.totalorder 1, %s11
    %p264 = scmp.lt.s32.totalorder %s11, 3
    %p265 = pnand %p263, %p264
    %p266 = pneg %p265
    // Predicated region
    $region37: #{wgan_unet_down_forward.3} parent=5 // pred_check
      _
    $region38: #{wgan_unet_down_forward.3} parent=5 // pred_check_branch
      %268 = sbr.rel (%p265) target = $region40
    $region39: #{wgan_unet_down_forward.3} parent=5 // pred_region
      %s269 = ssub.s32 %s11, 1
      %s270 = smul.u32 8, %s20
      %p271 = scmp.lt.s32.totalorder %s21, 1
      %s272 = scalar_select %p271, %s21, 1
      %p273 = scmp.lt.s32.totalorder %s270, 7
      %s274 = scalar_select %p273, %s270, 7
      %s275 = smul.addr %s272, 8
      %s276 = sadd.s32 %s274, %s275
      %s277 = smul.addr %s276, 4
      %s278 = scalar_lea.vmem %s0, %s277
      %p279 = pneg %p51
      %p280 = pneg %p48
      %s281 = smul.u32 8, %s20
      %p282 = scmp.lt.s32.totalorder %s21, 1
      %s283 = scalar_select %p282, %s21, 1
      %p284 = scmp.lt.s32.totalorder %s281, 7
      %s285 = scalar_select %p284, %s281, 7
      %s286 = smul.addr %s283, 8
      %s287 = sadd.s32 %s285, %s286
      %s288 = smul.addr %s287, 8
      %s289 = scalar_lea.vmem %s1, %s288
      %p290 = pneg %p79
      %p291 = pneg %p76
      %s292 = smul.u32 8, %s20
      %p293 = scmp.lt.s32.totalorder %s21, 1
      %s294 = scalar_select %p293, %s21, 1
      %p295 = scmp.lt.s32.totalorder %s292, 7
      %s296 = scalar_select %p295, %s292, 7
      %s297 = smul.addr %s294, 8
      %s298 = sadd.s32 %s296, %s297
      %s299 = smul.addr %s298, 8
      %s300 = scalar_lea.vmem %s2, %s299
      %p301 = pneg %p107
      %p302 = pneg %p104
      %s303 = smul.u32 8, %s20
      %p304 = scmp.lt.s32.totalorder %s303, 7
      %s305 = scalar_select %p304, %s303, 7
      %s306 = smul.addr %s305, 8
      %s307 = scalar_lea.vmem %s3, %s306
      %p308 = pneg %p133
      %p309 = pneg %p130
      %s310 = smul.u32 8, %s20
      %p311 = scmp.lt.s32.totalorder %s310, 7
      %s312 = scalar_select %p311, %s310, 7
      %s313 = smul.addr %s312, 8
      %s314 = scalar_lea.vmem %s4, %s313
      %p315 = pneg %p159
      %p316 = pneg %p156
      %p317 = pneg %p187
      %p318 = pneg %p184
      %s319 = smul.u32 8, %s20
      %p320 = scmp.lt.s32.totalorder %s21, 1
      %s321 = scalar_select %p320, %s21, 1
      %p322 = scmp.lt.s32.totalorder %s319, 7
      %s323 = scalar_select %p322, %s319, 7
      %s324 = smul.addr %s321, 8
      %s325 = sadd.s32 %s323, %s324
      %s326 = smul.addr %s325, 8
      %s327 = scalar_lea.vmem %s5, %s326
      %s328 = smul.u32 8, %s20
      %p329 = scmp.lt.s32.totalorder %s21, 1
      %s330 = scalar_select %p329, %s21, 1
      %p331 = scmp.lt.s32.totalorder %s328, 7
      %s332 = scalar_select %p331, %s328, 7
      %s333 = smul.addr %s330, 8
      %s334 = sadd.s32 %s332, %s333
      %s335 = smul.addr %s334, 4
      %s336 = scalar_lea.vmem %s0, %s335
      %s337 = smul.u32 8, %s20
      %s338 = smul.u32 8, %s20
      %p339 = scmp.lt.s32.totalorder %s21, 1
      %s340 = scalar_select %p339, %s21, 1
      %p341 = scmp.lt.s32.totalorder %s338, 7
      %s342 = scalar_select %p341, %s338, 7
      %s343 = smul.addr %s340, 8
      %s344 = sadd.s32 %s342, %s343
      %s345 = smul.addr %s344, 8
      %s346 = scalar_lea.vmem %s1, %s345
      %s347 = smul.u32 8, %s20
      %s348 = smul.u32 8, %s20
      %p349 = scmp.lt.s32.totalorder %s21, 1
      %s350 = scalar_select %p349, %s21, 1
      %p351 = scmp.lt.s32.totalorder %s348, 7
      %s352 = scalar_select %p351, %s348, 7
      %s353 = smul.addr %s350, 8
      %s354 = sadd.s32 %s352, %s353
      %s355 = smul.addr %s354, 8
      %s356 = scalar_lea.vmem %s2, %s355
      %s357 = smul.u32 8, %s20
      %s358 = smul.u32 8, %s20
      %p359 = scmp.lt.s32.totalorder %s358, 7
      %s360 = scalar_select %p359, %s358, 7
      %s361 = smul.addr %s360, 8
      %s362 = scalar_lea.vmem %s3, %s361
      %s363 = smul.u32 8, %s20
      %s364 = smul.u32 8, %s20
      %p365 = scmp.lt.s32.totalorder %s364, 7
      %s366 = scalar_select %p365, %s364, 7
      %s367 = smul.addr %s366, 8
      %s368 = scalar_lea.vmem %s4, %s367
      %s369 = smul.u32 8, %s20
      %s370 = smul.u32 8, %s20
      %p371 = scmp.lt.s32.totalorder %s21, 1
      %s372 = scalar_select %p371, %s21, 1
      %p373 = scmp.lt.s32.totalorder %s370, 7
      %s374 = scalar_select %p373, %s370, 7
      %s375 = smul.addr %s372, 8
      %s376 = sadd.s32 %s374, %s375
      %s377 = smul.addr %s376, 8
      %s378 = scalar_lea.vmem %s5, %s377
      %s379 = smul.u32 8, %s20
      %v380 = vld [vmem:[%s336] sm:$0xf]
      %v381 = vld [vmem:[%s336 + $0x4] sm:$0xf]
      %v382 = vld [vmem:[%s336 + $0x8] sm:$0xf]
      %v383 = vld [vmem:[%s336 + $0xc] sm:$0xf]
      %v384 = vld [vmem:[%s336 + $0x10] sm:$0xf]
      %v385 = vld [vmem:[%s336 + $0x14] sm:$0xf]
      %v386 = vld [vmem:[%s336 + $0x18] sm:$0xf]
      %v387 = vld [vmem:[%s336 + $0x1c] sm:$0xf]
      %v388 = vunpack.c.l.bf16 %v380
      %v389 = vunpack.c.l.bf16 %v381
      %v390 = vunpack.c.l.bf16 %v382
      %v391 = vunpack.c.l.bf16 %v383
      %v392 = vunpack.c.l.bf16 %v384
      %v393 = vunpack.c.l.bf16 %v385
      %v394 = vunpack.c.l.bf16 %v386
      %v395 = vunpack.c.l.bf16 %v387
      %v396 = vld [vmem:[%s346] sm:$0xff]
      %v397 = vld [vmem:[%s346 + $0x8] sm:$0xff]
      %v398 = vld [vmem:[%s346 + $0x10] sm:$0xff]
      %v399 = vld [vmem:[%s346 + $0x18] sm:$0xff]
      %v400 = vld [vmem:[%s346 + $0x20] sm:$0xff]
      %v401 = vld [vmem:[%s346 + $0x28] sm:$0xff]
      %v402 = vld [vmem:[%s346 + $0x30] sm:$0xff]
      %v403 = vld [vmem:[%s346 + $0x38] sm:$0xff]
      %405 = vset.pattern.permute.xlu0 0
      %406 = vperm.xlu0 %405, %v396
      %v407 = vpop.permute.xlu0 %406
      %410 = vset.pattern.permute.xlu0 0
      %411 = vperm.xlu0 %410, %v397
      %v412 = vpop.permute.xlu0 %411
      %415 = vset.pattern.permute.xlu0 0
      %416 = vperm.xlu0 %415, %v398
      %v417 = vpop.permute.xlu0 %416
      %420 = vset.pattern.permute.xlu0 0
      %421 = vperm.xlu0 %420, %v399
      %v422 = vpop.permute.xlu0 %421
      %425 = vset.pattern.permute.xlu0 0
      %426 = vperm.xlu0 %425, %v400
      %v427 = vpop.permute.xlu0 %426
      %430 = vset.pattern.permute.xlu0 0
      %431 = vperm.xlu0 %430, %v401
      %v432 = vpop.permute.xlu0 %431
      %435 = vset.pattern.permute.xlu0 0
      %436 = vperm.xlu0 %435, %v402
      %v437 = vpop.permute.xlu0 %436
      %440 = vset.pattern.permute.xlu0 0
      %441 = vperm.xlu0 %440, %v403
      %v442 = vpop.permute.xlu0 %441
      %v444 = vsub.f32 %v388, %v407
      %v445 = vsub.f32 %v389, %v412
      %v446 = vsub.f32 %v390, %v417
      %v447 = vsub.f32 %v391, %v422
      %v448 = vsub.f32 %v392, %v427
      %v449 = vsub.f32 %v393, %v432
      %v450 = vsub.f32 %v394, %v437
      %v451 = vsub.f32 %v395, %v442
      %v452 = vld [vmem:[%s356] sm:$0xff]
      %v453 = vld [vmem:[%s356 + $0x8] sm:$0xff]
      %v454 = vld [vmem:[%s356 + $0x10] sm:$0xff]
      %v455 = vld [vmem:[%s356 + $0x18] sm:$0xff]
      %v456 = vld [vmem:[%s356 + $0x20] sm:$0xff]
      %v457 = vld [vmem:[%s356 + $0x28] sm:$0xff]
      %v458 = vld [vmem:[%s356 + $0x30] sm:$0xff]
      %v459 = vld [vmem:[%s356 + $0x38] sm:$0xff]
      %461 = vset.pattern.permute.xlu0 0
      %462 = vperm.xlu0 %461, %v452
      %v463 = vpop.permute.xlu0 %462
      %466 = vset.pattern.permute.xlu0 0
      %467 = vperm.xlu0 %466, %v453
      %v468 = vpop.permute.xlu0 %467
      %471 = vset.pattern.permute.xlu0 0
      %472 = vperm.xlu0 %471, %v454
      %v473 = vpop.permute.xlu0 %472
      %476 = vset.pattern.permute.xlu0 0
      %477 = vperm.xlu0 %476, %v455
      %v478 = vpop.permute.xlu0 %477
      %481 = vset.pattern.permute.xlu0 0
      %482 = vperm.xlu0 %481, %v456
      %v483 = vpop.permute.xlu0 %482
      %486 = vset.pattern.permute.xlu0 0
      %487 = vperm.xlu0 %486, %v457
      %v488 = vpop.permute.xlu0 %487
      %491 = vset.pattern.permute.xlu0 0
      %492 = vperm.xlu0 %491, %v458
      %v493 = vpop.permute.xlu0 %492
      %496 = vset.pattern.permute.xlu0 0
      %497 = vperm.xlu0 %496, %v459
      %v498 = vpop.permute.xlu0 %497
      %v500 = vmul.f32 %v444, %v463
      %v501 = vmul.f32 %v445, %v468
      %v502 = vmul.f32 %v446, %v473
      %v503 = vmul.f32 %v447, %v478
      %v504 = vmul.f32 %v448, %v483
      %v505 = vmul.f32 %v449, %v488
      %v506 = vmul.f32 %v450, %v493
      %v507 = vmul.f32 %v451, %v498
      %v508 = vld [vmem:[%s362] sm:$0xff]
      %v509 = vld [vmem:[%s362 + $0x8] sm:$0xff]
      %v510 = vld [vmem:[%s362 + $0x10] sm:$0xff]
      %v511 = vld [vmem:[%s362 + $0x18] sm:$0xff]
      %v512 = vld [vmem:[%s362 + $0x20] sm:$0xff]
      %v513 = vld [vmem:[%s362 + $0x28] sm:$0xff]
      %v514 = vld [vmem:[%s362 + $0x30] sm:$0xff]
      %v515 = vld [vmem:[%s362 + $0x38] sm:$0xff]
      %v516 = vmul.f32 %v500, %v508
      %v517 = vmul.f32 %v501, %v509
      %v518 = vmul.f32 %v502, %v510
      %v519 = vmul.f32 %v503, %v511
      %v520 = vmul.f32 %v504, %v512
      %v521 = vmul.f32 %v505, %v513
      %v522 = vmul.f32 %v506, %v514
      %v523 = vmul.f32 %v507, %v515
      %v524 = vld [vmem:[%s368] sm:$0xff]
      %v525 = vld [vmem:[%s368 + $0x8] sm:$0xff]
      %v526 = vld [vmem:[%s368 + $0x10] sm:$0xff]
      %v527 = vld [vmem:[%s368 + $0x18] sm:$0xff]
      %v528 = vld [vmem:[%s368 + $0x20] sm:$0xff]
      %v529 = vld [vmem:[%s368 + $0x28] sm:$0xff]
      %v530 = vld [vmem:[%s368 + $0x30] sm:$0xff]
      %v531 = vld [vmem:[%s368 + $0x38] sm:$0xff]
      %v532 = vadd.f32 %v516, %v524
      %v533 = vadd.f32 %v517, %v525
      %v534 = vadd.f32 %v518, %v526
      %v535 = vadd.f32 %v519, %v527
      %v536 = vadd.f32 %v520, %v528
      %v537 = vadd.f32 %v521, %v529
      %v538 = vadd.f32 %v522, %v530
      %v539 = vadd.f32 %v523, %v531
      %v540 = vmax.f32 %v532, 0.0
      %v541 = vmax.f32 %v533, 0.0
      %v542 = vmax.f32 %v534, 0.0
      %v543 = vmax.f32 %v535, 0.0
      %v544 = vmax.f32 %v536, 0.0
      %v545 = vmax.f32 %v537, 0.0
      %v546 = vmax.f32 %v538, 0.0
      %v547 = vmax.f32 %v539, 0.0
      %548 = vst [vmem:[%s378] sm:$0xff] %v540
      %549 = vst [vmem:[%s378 + $0x8] sm:$0xff] %v541
      %550 = vst [vmem:[%s378 + $0x10] sm:$0xff] %v542
      %551 = vst [vmem:[%s378 + $0x18] sm:$0xff] %v543
      %552 = vst [vmem:[%s378 + $0x20] sm:$0xff] %v544
      %553 = vst [vmem:[%s378 + $0x28] sm:$0xff] %v545
      %554 = vst [vmem:[%s378 + $0x30] sm:$0xff] %v546
      %555 = vst [vmem:[%s378 + $0x38] sm:$0xff] %v547
      %s556 = smul.u32 8, %s20
      %p557 = scmp.lt.s32.totalorder %s21, 1
      %s558 = scalar_select %p557, %s21, 1
      %p559 = scmp.lt.s32.totalorder %s556, 7
      %s560 = scalar_select %p559, %s556, 7
      %s561 = smul.addr %s558, 8
      %s562 = sadd.s32 %s560, %s561
      %s563 = smul.addr %s562, 8
      %s564 = scalar_lea.vmem %s5, %s563
      // Predicated region
      $region41: #{wgan_unet_down_forward.3} parent=39 // pred_check
        %p565 = pneg %p184
      $region42: #{wgan_unet_down_forward.3} parent=39 // pred_check_branch
        %567 = sbr.rel (%p565) target = $region44
      $region43: #{wgan_unet_down_forward.3} parent=39 // pred_region
        %s568 = smul.u32 8, %s20
      $region44: #{wgan_unet_down_forward.3} parent=39 // pred_fallthru
        _
    $region40: #{wgan_unet_down_forward.3} parent=5 // pred_fallthru
      _
    %p569 = scmp.le.s32.totalorder 2, %s11
    // Predicated region
    $region45: #{wgan_unet_down_forward.3} parent=5 // pred_check
      %p570 = pneg %p569
    $region46: #{wgan_unet_down_forward.3} parent=5 // pred_check_branch
      %572 = sbr.rel (%p570) target = $region48
    $region47: #{wgan_unet_down_forward.3} parent=5 // pred_region
      %s573 = ssub.s32 %s11, 2
      // Predicated region
      $region49: #{wgan_unet_down_forward.3} parent=47 // pred_check
        %p574 = pneg %p190
      $region50: #{wgan_unet_down_forward.3} parent=47 // pred_check_branch
        %576 = sbr.rel (%p574) target = $region52
      $region51: #{wgan_unet_down_forward.3} parent=47 // pred_region
        %s577 = smul.u32 8, %s22
        %p578 = scmp.lt.s32.totalorder %s23, 1
        %s579 = scalar_select %p578, %s23, 1
        %p580 = scmp.lt.s32.totalorder %s577, 7
        %s581 = scalar_select %p580, %s577, 7
        %s582 = smul.addr %s579, 8
        %s583 = sadd.s32 %s581, %s582
        %s584 = smul.addr %s583, 8
        %s585 = scalar_lea.vmem %s5, %s584
      $region52: #{wgan_unet_down_forward.3} parent=47 // pred_fallthru
        _
    $region48: #{wgan_unet_down_forward.3} parent=5 // pred_fallthru
      _
  $region6: #{wgan_unet_down_forward.3} parent=0 // loop_footer
    %s15 = sadd.s32 1, %s11
  $region7: #{wgan_unet_down_forward.3} parent=0 // loop_footer_branch
    %10 = sbr.rel target = $region3
  $region8: #{wgan_unet_down_forward.3} parent=0 // loop_exit
    _

// kernel: wgan_unet_down_forward.2
$region0: #{wgan_unet_down_forward.2}
  #allocation0 [shape = 'u32[]', space=smem, size = 0x4, offset = 0x4, fixed_abs, tag = 'smem constant byte address 0x4 - core index']
  #allocation1 [shape = 'u32[72,128]{1,0:T(1,128)}', space=vmem, size = 0x9000, scoped, tag = 'internal scratch']
  %s0 = inlined_call_operand.vmem [shape: bf16[2,64,128], index: 0, kind: input, shape index: {}]
  %s1 = inlined_call_operand.vmem [shape: bf16[128,128], index: 1, kind: input, shape index: {}]
  %s2 = inlined_call_operand.vmem [shape: f32[2,64,1], index: 2, kind: input, shape index: {}]
  %s3 = inlined_call_operand.vmem [shape: bf16[2,64,128], index: 3, kind: output, shape index: {0}]
  %s4 = inlined_call_operand.vmem [shape: f32[2,64,128], index: 4, kind: output, shape index: {1}]
  %5 = xla_tuple %s3, %s4
  %s6 = sld [smem:[#allocation0]]
  $region53: #{wgan_unet_down_forward.2} parent=0
    _
  %s8 = ssub.s32 1, %s6
  %s9 = scalar_select 0, %s8, %s6
  loop: start=0, step=1, limit=4
  $region2: #{wgan_unet_down_forward.2} parent=0 // loop_pre_header
    _
  $region3: #{wgan_unet_down_forward.2} parent=0 // loop_header
    %s11 = sphi 0, %s15
    %p12 = scmp.ge.s32.totalorder %s11, 4
    %s18 = sphi 0, %s30
    %s19 = sphi 0, %s26
    %s20 = sphi 0, %s18
    %s21 = sphi 0, %s19
    %s22 = sphi 0, %s20
    %s23 = sphi 0, %s21
    %s35 = sphi 0, %s37
    %s38 = sphi 0, %s35
    %s39 = sphi 0, %s38
    %s55 = sphi 0, %s39
    %s59 = sphi 0, %s59
    %s61 = sphi 0, %s59
    %s62 = sphi 0, %s61
    %s76 = sphi 0, %s62
    %s84 = sphi 0, %s86
    %s87 = sphi 0, %s84
    %s88 = sphi 0, %s87
    %s104 = sphi 0, %s88
    %s112 = sphi 0, %s114
    %s115 = sphi 0, %s112
    %s116 = sphi 0, %s115
    %s132 = sphi 0, %s116
    %s140 = sphi 0, %s142
    %s143 = sphi 0, %s140
    %s144 = sphi 0, %s143
    %s160 = sphi 0, %s144
  $region4: #{wgan_unet_down_forward.2} parent=0 // loop_header_branch
    %14 = sbr.rel (%p12) target = $region8
  $region5: #{wgan_unet_down_forward.2} parent=0 // loop_body
    %s16 = ssub.s32 %s11, 1
    %s17 = ssub.s32 %s11, 2
    %s24 = sadd.s32 1, %s19
    %p25 = scmp.ge.s32.totalorder %s24, 1
    %s26 = scalar_select %p25, 0, %s24
    %s27 = sadd.s32 1, %s18
    %s28 = scalar_select %p25, %s27, %s18
    %p29 = scmp.ge.s32.totalorder %s28, 2
    %s30 = scalar_select %p29, 0, %s28
    %s31 = ssub.s32 %s18, %s30
    %s32 = ssub.s32 %s19, %s26
    %s33 = sor.u32 %s31, %s32
    %p34 = scmp.eq.s32.totalorder %s33, 0
    %s36 = sadd.s32 %s35, 1
    %s37 = scalar_select %p34, %s35, %s36
    %p40 = pneg %p34
    %p41 = scmp.eq.s32.totalorder %s11, 1
    %p42 = por %p40, %p41
    %p43 = scmp.ne.s32.totalorder %s35, %s38
    %p44 = scmp.eq.s32.totalorder %s11, 0
    %p45 = por %p43, %p44
    %p46 = scmp.ne.s32.totalorder %s35, %s38
    %p47 = scmp.eq.s32.totalorder %s16, 1
    %p48 = por %p46, %p47
    %p49 = scmp.ne.s32.totalorder %s38, %s39
    %p50 = scmp.eq.s32.totalorder %s16, 0
    %p51 = por %p49, %p50
    %p52 = scmp.ne.s32.totalorder %s38, %s39
    %p53 = scmp.eq.s32.totalorder %s17, 1
    %p54 = por %p52, %p53
    %p56 = scmp.ne.s32.totalorder %s39, %s55
    %p57 = scmp.eq.s32.totalorder %s17, 0
    %p58 = por %p56, %p57
    %s60 = sadd.s32 %s59, 1
    %p63 = scmp.eq.s32.totalorder %s11, 1
    %p64 = scmp.ne.s32.totalorder %s59, %s61
    %p65 = scmp.eq.s32.totalorder %s11, 0
    %p66 = por %p64, %p65
    %p67 = scmp.ne.s32.totalorder %s59, %s61
    %p68 = scmp.eq.s32.totalorder %s16, 1
    %p69 = por %p67, %p68
    %p70 = scmp.ne.s32.totalorder %s61, %s62
    %p71 = scmp.eq.s32.totalorder %s16, 0
    %p72 = por %p70, %p71
    %p73 = scmp.ne.s32.totalorder %s61, %s62
    %p74 = scmp.eq.s32.totalorder %s17, 1
    %p75 = por %p73, %p74
    %p77 = scmp.ne.s32.totalorder %s62, %s76
    %p78 = scmp.eq.s32.totalorder %s17, 0
    %p79 = por %p77, %p78
    %s80 = ssub.s32 %s18, %s30
    %s81 = ssub.s32 %s19, %s26
    %s82 = sor.u32 %s80, %s81
    %p83 = scmp.eq.s32.totalorder %s82, 0
    %s85 = sadd.s32 %s84, 1
    %s86 = scalar_select %p83, %s84, %s85
    %p89 = pneg %p83
    %p90 = scmp.eq.s32.totalorder %s11, 1
    %p91 = por %p89, %p90
    %p92 = scmp.ne.s32.totalorder %s84, %s87
    %p93 = scmp.eq.s32.totalorder %s11, 0
    %p94 = por %p92, %p93
    %p95 = scmp.ne.s32.totalorder %s84, %s87
    %p96 = scmp.eq.s32.totalorder %s16, 1
    %p97 = por %p95, %p96
    %p98 = scmp.ne.s32.totalorder %s87, %s88
    %p99 = scmp.eq.s32.totalorder %s16, 0
    %p100 = por %p98, %p99
    %p101 = scmp.ne.s32.totalorder %s87, %s88
    %p102 = scmp.eq.s32.totalorder %s17, 1
    %p103 = por %p101, %p102
    %p105 = scmp.ne.s32.totalorder %s88, %s104
    %p106 = scmp.eq.s32.totalorder %s17, 0
    %p107 = por %p105, %p106
    %s108 = ssub.s32 %s18, %s30
    %s109 = ssub.s32 %s19, %s26
    %s110 = sor.u32 %s108, %s109
    %p111 = scmp.eq.s32.totalorder %s110, 0
    %s113 = sadd.s32 %s112, 1
    %s114 = scalar_select %p111, %s112, %s113
    %p117 = pneg %p111
    %p118 = scmp.eq.s32.totalorder %s11, 1
    %p119 = por %p117, %p118
    %p120 = scmp.ne.s32.totalorder %s112, %s115
    %p121 = scmp.eq.s32.totalorder %s11, 0
    %p122 = por %p120, %p121
    %p123 = scmp.ne.s32.totalorder %s112, %s115
    %p124 = scmp.eq.s32.totalorder %s16, 1
    %p125 = por %p123, %p124
    %p126 = scmp.ne.s32.totalorder %s115, %s116
    %p127 = scmp.eq.s32.totalorder %s16, 0
    %p128 = por %p126, %p127
    %p129 = scmp.ne.s32.totalorder %s115, %s116
    %p130 = scmp.eq.s32.totalorder %s17, 1
    %p131 = por %p129, %p130
    %p133 = scmp.ne.s32.totalorder %s116, %s132
    %p134 = scmp.eq.s32.totalorder %s17, 0
    %p135 = por %p133, %p134
    %s136 = ssub.s32 %s18, %s30
    %s137 = ssub.s32 %s19, %s26
    %s138 = sor.u32 %s136, %s137
    %p139 = scmp.eq.s32.totalorder %s138, 0
    %s141 = sadd.s32 %s140, 1
    %s142 = scalar_select %p139, %s140, %s141
    %p145 = pneg %p139
    %p146 = scmp.eq.s32.totalorder %s11, 1
    %p147 = por %p145, %p146
    %p148 = scmp.ne.s32.totalorder %s140, %s143
    %p149 = scmp.eq.s32.totalorder %s11, 0
    %p150 = por %p148, %p149
    %p151 = scmp.ne.s32.totalorder %s140, %s143
    %p152 = scmp.eq.s32.totalorder %s16, 1
    %p153 = por %p151, %p152
    %p154 = scmp.ne.s32.totalorder %s143, %s144
    %p155 = scmp.eq.s32.totalorder %s16, 0
    %p156 = por %p154, %p155
    %p157 = scmp.ne.s32.totalorder %s143, %s144
    %p158 = scmp.eq.s32.totalorder %s17, 1
    %p159 = por %p157, %p158
    %p161 = scmp.ne.s32.totalorder %s144, %s160
    %p162 = scmp.eq.s32.totalorder %s17, 0
    %p163 = por %p161, %p162
    %p164 = scmp.le.s32.totalorder 1, %s11
    %p165 = scmp.lt.s32.totalorder %s11, 3
    %p166 = pnand %p164, %p165
    %p167 = pneg %p166
    // Predicated region
    $region9: #{wgan_unet_down_forward.2} parent=5 // pred_check
      _
    $region10: #{wgan_unet_down_forward.2} parent=5 // pred_check_branch
      %169 = sbr.rel (%p166) target = $region12
    $region11: #{wgan_unet_down_forward.2} parent=5 // pred_region
      %s170 = ssub.s32 %s11, 1
      // Predicated region
      $region13: #{wgan_unet_down_forward.2} parent=11 // pred_check
        %p171 = pneg %p72
      $region14: #{wgan_unet_down_forward.2} parent=11 // pred_check_branch
        %173 = sbr.rel (%p171) target = $region16
      $region15: #{wgan_unet_down_forward.2} parent=11 // pred_region
        _
      $region16: #{wgan_unet_down_forward.2} parent=11 // pred_fallthru
        _
    $region12: #{wgan_unet_down_forward.2} parent=5 // pred_fallthru
      _
    %p174 = scmp.lt.s32.totalorder %s11, 2
    // Predicated region
    $region17: #{wgan_unet_down_forward.2} parent=5 // pred_check
      %p175 = pneg %p174
    $region18: #{wgan_unet_down_forward.2} parent=5 // pred_check_branch
      %177 = sbr.rel (%p175) target = $region20
    $region19: #{wgan_unet_down_forward.2} parent=5 // pred_region
      // Predicated region
      $region21: #{wgan_unet_down_forward.2} parent=19 // pred_check
        %p178 = pneg %p45
      $region22: #{wgan_unet_down_forward.2} parent=19 // pred_check_branch
        %180 = sbr.rel (%p178) target = $region24
      $region23: #{wgan_unet_down_forward.2} parent=19 // pred_region
        %s181 = smul.u32 8, %s19
        %p182 = scmp.lt.s32.totalorder %s18, 1
        %s183 = scalar_select %p182, %s18, 1
        %p184 = scmp.lt.s32.totalorder %s181, 7
        %s185 = scalar_select %p184, %s181, 7
        %s186 = smul.addr %s183, 8
        %s187 = sadd.s32 %s185, %s186
        %s188 = smul.addr %s187, 4
        %s189 = scalar_lea.vmem %s0, %s188
        %s190 = smul.u32 8, %s19
      $region24: #{wgan_unet_down_forward.2} parent=19 // pred_fallthru
        _
      // Predicated region
      $region25: #{wgan_unet_down_forward.2} parent=19 // pred_check
        %p191 = pneg %p94
      $region26: #{wgan_unet_down_forward.2} parent=19 // pred_check_branch
        %193 = sbr.rel (%p191) target = $region28
      $region27: #{wgan_unet_down_forward.2} parent=19 // pred_region
        %s194 = smul.u32 8, %s19
        %p195 = scmp.lt.s32.totalorder %s18, 1
        %s196 = scalar_select %p195, %s18, 1
        %p197 = scmp.lt.s32.totalorder %s194, 7
        %s198 = scalar_select %p197, %s194, 7
        %s199 = smul.addr %s196, 8
        %s200 = sadd.s32 %s198, %s199
        %s201 = smul.addr %s200, 8
        %s202 = scalar_lea.vmem %s2, %s201
        %s203 = smul.u32 8, %s19
      $region28: #{wgan_unet_down_forward.2} parent=19 // pred_fallthru
        _
    $region20: #{wgan_unet_down_forward.2} parent=5 // pred_fallthru
      _
    %p204 = scmp.le.s32.totalorder 1, %s11
    %p205 = scmp.lt.s32.totalorder %s11, 3
    %p206 = pnand %p204, %p205
    %p207 = pneg %p206
    // Predicated region
    $region29: #{wgan_unet_down_forward.2} parent=5 // pred_check
      _
    $region30: #{wgan_unet_down_forward.2} parent=5 // pred_check_branch
      %209 = sbr.rel (%p206) target = $region32
    $region31: #{wgan_unet_down_forward.2} parent=5 // pred_region
      %s210 = ssub.s32 %s11, 1
      %s211 = smul.u32 8, %s21
      %p212 = scmp.lt.s32.totalorder %s20, 1
      %s213 = scalar_select %p212, %s20, 1
      %p214 = scmp.lt.s32.totalorder %s211, 7
      %s215 = scalar_select %p214, %s211, 7
      %s216 = smul.addr %s213, 8
      %s217 = sadd.s32 %s215, %s216
      %s218 = smul.addr %s217, 4
      %s219 = scalar_lea.vmem %s0, %s218
      %p220 = pneg %p51
      %p221 = pneg %p48
      %p222 = pneg %p72
      %p223 = pneg %p69
      %s224 = smul.u32 8, %s21
      %p225 = scmp.lt.s32.totalorder %s20, 1
      %s226 = scalar_select %p225, %s20, 1
      %p227 = scmp.lt.s32.totalorder %s224, 7
      %s228 = scalar_select %p227, %s224, 7
      %s229 = smul.addr %s226, 8
      %s230 = sadd.s32 %s228, %s229
      %s231 = smul.addr %s230, 8
      %s232 = scalar_lea.vmem %s2, %s231
      %p233 = pneg %p100
      %p234 = pneg %p97
      %p235 = pneg %p128
      %p236 = pneg %p125
      %s237 = smul.u32 8, %s21
      %p238 = scmp.lt.s32.totalorder %s20, 1
      %s239 = scalar_select %p238, %s20, 1
      %p240 = scmp.lt.s32.totalorder %s237, 7
      %s241 = scalar_select %p240, %s237, 7
      %s242 = smul.addr %s239, 8
      %s243 = sadd.s32 %s241, %s242
      %s244 = smul.addr %s243, 4
      %s245 = scalar_lea.vmem %s3, %s244
      %p246 = pneg %p156
      %p247 = pneg %p153
      %s248 = smul.u32 8, %s21
      %p249 = scmp.lt.s32.totalorder %s20, 1
      %s250 = scalar_select %p249, %s20, 1
      %p251 = scmp.lt.s32.totalorder %s248, 7
      %s252 = scalar_select %p251, %s248, 7
      %s253 = smul.addr %s250, 8
      %s254 = sadd.s32 %s252, %s253
      %s255 = smul.addr %s254, 8
      %s256 = scalar_lea.vmem %s4, %s255
      %s257 = smul.u32 8, %s21
      %p258 = scmp.lt.s32.totalorder %s20, 1
      %s259 = scalar_select %p258, %s20, 1
      %p260 = scmp.lt.s32.totalorder %s257, 7
      %s261 = scalar_select %p260, %s257, 7
      %s262 = smul.addr %s259, 8
      %s263 = sadd.s32 %s261, %s262
      %s264 = smul.addr %s263, 4
      %s265 = scalar_lea.vmem %s0, %s264
      %s266 = smul.u32 8, %s21
      %s267 = smul.u32 8, %s21
      %p268 = scmp.lt.s32.totalorder %s20, 1
      %s269 = scalar_select %p268, %s20, 1
      %p270 = scmp.lt.s32.totalorder %s267, 7
      %s271 = scalar_select %p270, %s267, 7
      %s272 = smul.addr %s269, 8
      %s273 = sadd.s32 %s271, %s272
      %s274 = smul.addr %s273, 8
      %s275 = scalar_lea.vmem %s2, %s274
      %s276 = smul.u32 8, %s21
      %s277 = smul.u32 8, %s21
      %p278 = scmp.lt.s32.totalorder %s20, 1
      %s279 = scalar_select %p278, %s20, 1
      %p280 = scmp.lt.s32.totalorder %s277, 7
      %s281 = scalar_select %p280, %s277, 7
      %s282 = smul.addr %s279, 8
      %s283 = sadd.s32 %s281, %s282
      %s284 = smul.addr %s283, 4
      %s285 = scalar_lea.vmem %s3, %s284
      %s286 = smul.u32 8, %s21
      %s287 = smul.u32 8, %s21
      %p288 = scmp.lt.s32.totalorder %s20, 1
      %s289 = scalar_select %p288, %s20, 1
      %p290 = scmp.lt.s32.totalorder %s287, 7
      %s291 = scalar_select %p290, %s287, 7
      %s292 = smul.addr %s289, 8
      %s293 = sadd.s32 %s291, %s292
      %s294 = smul.addr %s293, 8
      %s295 = scalar_lea.vmem %s4, %s294
      %s296 = smul.u32 8, %s21
      %v297 = vld [vmem:[%s265] sm:$0xf]
      %v298 = vld [vmem:[%s265 + $0x4] sm:$0xf]
      %v299 = vld [vmem:[%s265 + $0x8] sm:$0xf]
      %v300 = vld [vmem:[%s265 + $0xc] sm:$0xf]
      %v301 = vld [vmem:[%s265 + $0x10] sm:$0xf]
      %v302 = vld [vmem:[%s265 + $0x14] sm:$0xf]
      %v303 = vld [vmem:[%s265 + $0x18] sm:$0xf]
      %v304 = vld [vmem:[%s265 + $0x1c] sm:$0xf]
      %v305 = vld [vmem:[%s1] sm:$0xf]
      %v306 = vld [vmem:[%s1 + $0x4] sm:$0xf]
      %v307 = vld [vmem:[%s1 + $0x8] sm:$0xf]
      %v308 = vld [vmem:[%s1 + $0xc] sm:$0xf]
      %v309 = vld [vmem:[%s1 + $0x10] sm:$0xf]
      %v310 = vld [vmem:[%s1 + $0x14] sm:$0xf]
      %v311 = vld [vmem:[%s1 + $0x18] sm:$0xf]
      %v312 = vld [vmem:[%s1 + $0x1c] sm:$0xf]
      %v313 = vld [vmem:[%s1 + $0x20] sm:$0xf]
      %v314 = vld [vmem:[%s1 + $0x24] sm:$0xf]
      %v315 = vld [vmem:[%s1 + $0x28] sm:$0xf]
      %v316 = vld [vmem:[%s1 + $0x2c] sm:$0xf]
      %v317 = vld [vmem:[%s1 + $0x30] sm:$0xf]
      %v318 = vld [vmem:[%s1 + $0x34] sm:$0xf]
      %v319 = vld [vmem:[%s1 + $0x38] sm:$0xf]
      %v320 = vld [vmem:[%s1 + $0x3c] sm:$0xf]
      %v329 = vunpack.c.l.b16 %v297
      %v330 = vunpack.c.l.b16 %v298
      %v331 = vunpack.c.l.b16 %v299
      %v332 = vunpack.c.l.b16 %v300
      %v333 = vunpack.c.l.b16 %v301
      %v334 = vunpack.c.l.b16 %v302
      %v335 = vunpack.c.l.b16 %v303
      %v336 = vunpack.c.l.b16 %v304
      %v337 = vpack.c.b16 %v330, %v329
      %v338 = vpack.c.b16 %v332, %v331
      %v339 = vpack.c.b16 %v334, %v333
      %v340 = vpack.c.b16 %v336, %v335
      %v361 = vunpack.c.l.b16 %v305
      %v362 = vunpack.c.l.b16 %v306
      %v363 = vunpack.c.l.b16 %v307
      %v364 = vunpack.c.l.b16 %v308
      %v365 = vunpack.c.l.b16 %v309
      %v366 = vunpack.c.l.b16 %v310
      %v367 = vunpack.c.l.b16 %v311
      %v368 = vunpack.c.l.b16 %v312
      %v369 = vunpack.c.l.b16 %v313
      %v370 = vunpack.c.l.b16 %v314
      %v371 = vunpack.c.l.b16 %v315
      %v372 = vunpack.c.l.b16 %v316
      %v373 = vunpack.c.l.b16 %v317
      %v374 = vunpack.c.l.b16 %v318
      %v375 = vunpack.c.l.b16 %v319
      %v376 = vunpack.c.l.b16 %v320
      %v377 = vpack.c.b16 %v362, %v361
      %v378 = vpack.c.b16 %v364, %v363
      %v379 = vpack.c.b16 %v366, %v365
      %v380 = vpack.c.b16 %v368, %v367
      %v381 = vpack.c.b16 %v370, %v369
      %v382 = vpack.c.b16 %v372, %v371
      %v383 = vpack.c.b16 %v374, %v373
      %v384 = vpack.c.b16 %v376, %v375
      %393 = vmatpush.bf16.msra.mxu0 %v384
      %394 = vmatpush.bf16.msra.mxu0 %v383
      %395 = vmatpush.bf16.msra.mxu0 %v382
      %396 = vmatpush.bf16.msra.mxu0 %v381
      %397 = vmatpush.bf16.msra.mxu0 %v380
      %398 = vmatpush.bf16.msra.mxu0 %v379
      %399 = vmatpush.bf16.msra.mxu0 %v378
      %400 = vmatpush.bf16.msra.mxu0 %v377
      %401 = vmatmul.bf16.gmra.mxu0 %v337
      %v402 = vpop.f32.mrf.mxu0
      %v403 = vadd.f32 0.0, %v402
      %v404 = vpop.f32.mrf.mxu0
      %v405 = vadd.f32 0.0, %v404
      %406 = vmatmul.bf16.gmra.mxu0 %v338
      %v407 = vpop.f32.mrf.mxu0
      %v408 = vadd.f32 0.0, %v407
      %v409 = vpop.f32.mrf.mxu0
      %v410 = vadd.f32 0.0, %v409
      %411 = vmatmul.bf16.gmra.mxu0 %v339
      %v412 = vpop.f32.mrf.mxu0
      %v413 = vadd.f32 0.0, %v412
      %v414 = vpop.f32.mrf.mxu0
      %v415 = vadd.f32 0.0, %v414
      %416 = vmatmul.bf16.gmra.mxu0 %v340
      %v417 = vpop.f32.mrf.mxu0
      %v418 = vadd.f32 0.0, %v417
      %v419 = vpop.f32.mrf.mxu0
      %v420 = vadd.f32 0.0, %v419
      %421 = vdwg.mxu0
      %v422 = vld [vmem:[%s275] sm:$0xff]
      %v423 = vld [vmem:[%s275 + $0x8] sm:$0xff]
      %v424 = vld [vmem:[%s275 + $0x10] sm:$0xff]
      %v425 = vld [vmem:[%s275 + $0x18] sm:$0xff]
      %v426 = vld [vmem:[%s275 + $0x20] sm:$0xff]
      %v427 = vld [vmem:[%s275 + $0x28] sm:$0xff]
      %v428 = vld [vmem:[%s275 + $0x30] sm:$0xff]
      %v429 = vld [vmem:[%s275 + $0x38] sm:$0xff]
      %v430 = vmax.f32 %v422, 0.0
      %v431 = vmax.f32 %v423, 0.0
      %v432 = vmax.f32 %v424, 0.0
      %v433 = vmax.f32 %v425, 0.0
      %v434 = vmax.f32 %v426, 0.0
      %v435 = vmax.f32 %v427, 0.0
      %v436 = vmax.f32 %v428, 0.0
      %v437 = vmax.f32 %v429, 0.0
      %v438 = vmin.f32 %v430, 1.0
      %v439 = vmin.f32 %v431, 1.0
      %v440 = vmin.f32 %v432, 1.0
      %v441 = vmin.f32 %v433, 1.0
      %v442 = vmin.f32 %v434, 1.0
      %v443 = vmin.f32 %v435, 1.0
      %v444 = vmin.f32 %v436, 1.0
      %v445 = vmin.f32 %v437, 1.0
      %v446 = vadd.f32 %v422, 1e-08
      %v447 = vadd.f32 %v423, 1e-08
      %v448 = vadd.f32 %v424, 1e-08
      %v449 = vadd.f32 %v425, 1e-08
      %v450 = vadd.f32 %v426, 1e-08
      %v451 = vadd.f32 %v427, 1e-08
      %v452 = vadd.f32 %v428, 1e-08
      %v453 = vadd.f32 %v429, 1e-08
      %v454 = vrcp.pop %v446
      %v455 = vmul.f32 %v446, %v454
      %v456 = vsub.f32 1.0, %v455
      %v457 = vmul.f32 %v454, %v456
      %v458 = vadd.f32 %v454, %v457
      %vm459 = vweird.f32 %v446
      %vm460 = vweird.f32 %v454
      %vm461 = vmor %vm459, %vm460
      %v462 = vsel %vm461, %v454, %v458
      %v463 = vand.u32 2147483647, %v446
      %vm464 = vcmp.eq.f32.partialorder %v463, 8.507059e+37
      %v465 = vand.u32 %v446, 2147483648
      %v466 = vor.u32 1.1754944e-38, %v465
      %v467 = vsel %vm464, %v466, %v462
      %v468 = vmul.f32 100.0, %v467
      %v469 = vrcp.pop %v447
      %v470 = vmul.f32 %v447, %v469
      %v471 = vsub.f32 1.0, %v470
      %v472 = vmul.f32 %v469, %v471
      %v473 = vadd.f32 %v469, %v472
      %vm474 = vweird.f32 %v447
      %vm475 = vweird.f32 %v469
      %vm476 = vmor %vm474, %vm475
      %v477 = vsel %vm476, %v469, %v473
      %v478 = vand.u32 2147483647, %v447
      %vm479 = vcmp.eq.f32.partialorder %v478, 8.507059e+37
      %v480 = vand.u32 %v447, 2147483648
      %v481 = vor.u32 1.1754944e-38, %v480
      %v482 = vsel %vm479, %v481, %v477
      %v483 = vmul.f32 100.0, %v482
      %v484 = vrcp.pop %v448
      %v485 = vmul.f32 %v448, %v484
      %v486 = vsub.f32 1.0, %v485
      %v487 = vmul.f32 %v484, %v486
      %v488 = vadd.f32 %v484, %v487
      %vm489 = vweird.f32 %v448
      %vm490 = vweird.f32 %v484
      %vm491 = vmor %vm489, %vm490
      %v492 = vsel %vm491, %v484, %v488
      %v493 = vand.u32 2147483647, %v448
      %vm494 = vcmp.eq.f32.partialorder %v493, 8.507059e+37
      %v495 = vand.u32 %v448, 2147483648
      %v496 = vor.u32 1.1754944e-38, %v495
      %v497 = vsel %vm494, %v496, %v492
      %v498 = vmul.f32 100.0, %v497
      %v499 = vrcp.pop %v449
      %v500 = vmul.f32 %v449, %v499
      %v501 = vsub.f32 1.0, %v500
      %v502 = vmul.f32 %v499, %v501
      %v503 = vadd.f32 %v499, %v502
      %vm504 = vweird.f32 %v449
      %vm505 = vweird.f32 %v499
      %vm506 = vmor %vm504, %vm505
      %v507 = vsel %vm506, %v499, %v503
      %v508 = vand.u32 2147483647, %v449
      %vm509 = vcmp.eq.f32.partialorder %v508, 8.507059e+37
      %v510 = vand.u32 %v449, 2147483648
      %v511 = vor.u32 1.1754944e-38, %v510
      %v512 = vsel %vm509, %v511, %v507
      %v513 = vmul.f32 100.0, %v512
      %v514 = vrcp.pop %v450
      %v515 = vmul.f32 %v450, %v514
      %v516 = vsub.f32 1.0, %v515
      %v517 = vmul.f32 %v514, %v516
      %v518 = vadd.f32 %v514, %v517
      %vm519 = vweird.f32 %v450
      %vm520 = vweird.f32 %v514
      %vm521 = vmor %vm519, %vm520
      %v522 = vsel %vm521, %v514, %v518
      %v523 = vand.u32 2147483647, %v450
      %vm524 = vcmp.eq.f32.partialorder %v523, 8.507059e+37
      %v525 = vand.u32 %v450, 2147483648
      %v526 = vor.u32 1.1754944e-38, %v525
      %v527 = vsel %vm524, %v526, %v522
      %v528 = vmul.f32 100.0, %v527
      %v529 = vrcp.pop %v451
      %v530 = vmul.f32 %v451, %v529
      %v531 = vsub.f32 1.0, %v530
      %v532 = vmul.f32 %v529, %v531
      %v533 = vadd.f32 %v529, %v532
      %vm534 = vweird.f32 %v451
      %vm535 = vweird.f32 %v529
      %vm536 = vmor %vm534, %vm535
      %v537 = vsel %vm536, %v529, %v533
      %v538 = vand.u32 2147483647, %v451
      %vm539 = vcmp.eq.f32.partialorder %v538, 8.507059e+37
      %v540 = vand.u32 %v451, 2147483648
      %v541 = vor.u32 1.1754944e-38, %v540
      %v542 = vsel %vm539, %v541, %v537
      %v543 = vmul.f32 100.0, %v542
      %v544 = vrcp.pop %v452
      %v545 = vmul.f32 %v452, %v544
      %v546 = vsub.f32 1.0, %v545
      %v547 = vmul.f32 %v544, %v546
      %v548 = vadd.f32 %v544, %v547
      %vm549 = vweird.f32 %v452
      %vm550 = vweird.f32 %v544
      %vm551 = vmor %vm549, %vm550
      %v552 = vsel %vm551, %v544, %v548
      %v553 = vand.u32 2147483647, %v452
      %vm554 = vcmp.eq.f32.partialorder %v553, 8.507059e+37
      %v555 = vand.u32 %v452, 2147483648
      %v556 = vor.u32 1.1754944e-38, %v555
      %v557 = vsel %vm554, %v556, %v552
      %v558 = vmul.f32 100.0, %v557
      %v559 = vrcp.pop %v453
      %v560 = vmul.f32 %v453, %v559
      %v561 = vsub.f32 1.0, %v560
      %v562 = vmul.f32 %v559, %v561
      %v563 = vadd.f32 %v559, %v562
      %vm564 = vweird.f32 %v453
      %vm565 = vweird.f32 %v559
      %vm566 = vmor %vm564, %vm565
      %v567 = vsel %vm566, %v559, %v563
      %v568 = vand.u32 2147483647, %v453
      %vm569 = vcmp.eq.f32.partialorder %v568, 8.507059e+37
      %v570 = vand.u32 %v453, 2147483648
      %v571 = vor.u32 1.1754944e-38, %v570
      %v572 = vsel %vm569, %v571, %v567
      %v573 = vmul.f32 100.0, %v572
      %v574 = vmul.f32 %v468, %v438
      %v575 = vmul.f32 %v483, %v439
      %v576 = vmul.f32 %v498, %v440
      %v577 = vmul.f32 %v513, %v441
      %v578 = vmul.f32 %v528, %v442
      %v579 = vmul.f32 %v543, %v443
      %v580 = vmul.f32 %v558, %v444
      %v581 = vmul.f32 %v573, %v445
      %583 = vset.pattern.permute.xlu0 0
      %584 = vperm.xlu0 %583, %v574
      %v585 = vpop.permute.xlu0 %584
      %588 = vset.pattern.permute.xlu0 0
      %589 = vperm.xlu0 %588, %v575
      %v590 = vpop.permute.xlu0 %589
      %593 = vset.pattern.permute.xlu0 0
      %594 = vperm.xlu0 %593, %v576
      %v595 = vpop.permute.xlu0 %594
      %598 = vset.pattern.permute.xlu0 0
      %599 = vperm.xlu0 %598, %v577
      %v600 = vpop.permute.xlu0 %599
      %603 = vset.pattern.permute.xlu0 0
      %604 = vperm.xlu0 %603, %v578
      %v605 = vpop.permute.xlu0 %604
      %608 = vset.pattern.permute.xlu0 0
      %609 = vperm.xlu0 %608, %v579
      %v610 = vpop.permute.xlu0 %609
      %613 = vset.pattern.permute.xlu0 0
      %614 = vperm.xlu0 %613, %v580
      %v615 = vpop.permute.xlu0 %614
      %618 = vset.pattern.permute.xlu0 0
      %619 = vperm.xlu0 %618, %v581
      %v620 = vpop.permute.xlu0 %619
      %v622 = vmul.f32 %v403, %v585
      %v623 = vmul.f32 %v405, %v590
      %v624 = vmul.f32 %v408, %v595
      %v625 = vmul.f32 %v410, %v600
      %v626 = vmul.f32 %v413, %v605
      %v627 = vmul.f32 %v415, %v610
      %v628 = vmul.f32 %v418, %v615
      %v629 = vmul.f32 %v420, %v620
      %v630 = vpack.c.bf16 %v622, %v622
      %v631 = vpack.c.bf16 %v623, %v623
      %v632 = vpack.c.bf16 %v624, %v624
      %v633 = vpack.c.bf16 %v625, %v625
      %v634 = vpack.c.bf16 %v626, %v626
      %v635 = vpack.c.bf16 %v627, %v627
      %v636 = vpack.c.bf16 %v628, %v628
      %v637 = vpack.c.bf16 %v629, %v629
      %638 = vst [vmem:[%s285] sm:$0xf] %v630
      %639 = vst [vmem:[%s285 + $0x4] sm:$0xf] %v631
      %640 = vst [vmem:[%s285 + $0x8] sm:$0xf] %v632
      %641 = vst [vmem:[%s285 + $0xc] sm:$0xf] %v633
      %642 = vst [vmem:[%s285 + $0x10] sm:$0xf] %v634
      %643 = vst [vmem:[%s285 + $0x14] sm:$0xf] %v635
      %644 = vst [vmem:[%s285 + $0x18] sm:$0xf] %v636
      %645 = vst [vmem:[%s285 + $0x1c] sm:$0xf] %v637
      %v646 = vlaneseq
      %v647 = vand.u32 %v646, 127
      %648 = vadd.xlane.f32.xlu0 %v622
      %v649 = vpop.xlane.xlu0 %648
      %650 = vadd.xlane.f32.xlu0 %v623
      %v651 = vpop.xlane.xlu0 %650
      %652 = vadd.xlane.f32.xlu0 %v624
      %v653 = vpop.xlane.xlu0 %652
      %654 = vadd.xlane.f32.xlu0 %v625
      %v655 = vpop.xlane.xlu0 %654
      %656 = vadd.xlane.f32.xlu0 %v626
      %v657 = vpop.xlane.xlu0 %656
      %658 = vadd.xlane.f32.xlu0 %v627
      %v659 = vpop.xlane.xlu0 %658
      %660 = vadd.xlane.f32.xlu0 %v628
      %v661 = vpop.xlane.xlu0 %660
      %662 = vadd.xlane.f32.xlu0 %v629
      %v663 = vpop.xlane.xlu0 %662
      %v664 = vmul.f32 %v622, %v622
      %v665 = vmul.f32 %v623, %v623
      %v666 = vmul.f32 %v624, %v624
      %v667 = vmul.f32 %v625, %v625
      %v668 = vmul.f32 %v626, %v626
      %v669 = vmul.f32 %v627, %v627
      %v670 = vmul.f32 %v628, %v628
      %v671 = vmul.f32 %v629, %v629
      %672 = vadd.xlane.f32.xlu0 %v664
      %v673 = vpop.xlane.xlu0 %672
      %674 = vadd.xlane.f32.xlu0 %v665
      %v675 = vpop.xlane.xlu0 %674
      %676 = vadd.xlane.f32.xlu0 %v666
      %v677 = vpop.xlane.xlu0 %676
      %678 = vadd.xlane.f32.xlu0 %v667
      %v679 = vpop.xlane.xlu0 %678
      %680 = vadd.xlane.f32.xlu0 %v668
      %v681 = vpop.xlane.xlu0 %680
      %682 = vadd.xlane.f32.xlu0 %v669
      %v683 = vpop.xlane.xlu0 %682
      %684 = vadd.xlane.f32.xlu0 %v670
      %v685 = vpop.xlane.xlu0 %684
      %686 = vadd.xlane.f32.xlu0 %v671
      %v687 = vpop.xlane.xlu0 %686
      %vm688 = vcmp.eq.s32.totalorder %v647, 0
      %vm689 = vcmp.eq.s32.totalorder %v647, 1
      %vm690 = vcmp.eq.s32.totalorder %v647, 2
      %v691 = vsel %vm690, %v673, 0.0
      %v692 = vsel %vm690, %v675, 0.0
      %v693 = vsel %vm690, %v677, 0.0
      %v694 = vsel %vm690, %v679, 0.0
      %v695 = vsel %vm690, %v681, 0.0
      %v696 = vsel %vm690, %v683, 0.0
      %v697 = vsel %vm690, %v685, 0.0
      %v698 = vsel %vm690, %v687, 0.0
      %v699 = vsel %vm689, %v649, %v691
      %v700 = vsel %vm689, %v651, %v692
      %v701 = vsel %vm689, %v653, %v693
      %v702 = vsel %vm689, %v655, %v694
      %v703 = vsel %vm689, %v657, %v695
      %v704 = vsel %vm689, %v659, %v696
      %v705 = vsel %vm689, %v661, %v697
      %v706 = vsel %vm689, %v663, %v698
      %708 = vset.pattern.permute.xlu0 0
      %709 = vperm.xlu0 %708, %v438
      %v710 = vpop.permute.xlu0 %709
      %713 = vset.pattern.permute.xlu0 0
      %714 = vperm.xlu0 %713, %v439
      %v715 = vpop.permute.xlu0 %714
      %718 = vset.pattern.permute.xlu0 0
      %719 = vperm.xlu0 %718, %v440
      %v720 = vpop.permute.xlu0 %719
      %723 = vset.pattern.permute.xlu0 0
      %724 = vperm.xlu0 %723, %v441
      %v725 = vpop.permute.xlu0 %724
      %728 = vset.pattern.permute.xlu0 0
      %729 = vperm.xlu0 %728, %v442
      %v730 = vpop.permute.xlu0 %729
      %733 = vset.pattern.permute.xlu0 0
      %734 = vperm.xlu0 %733, %v443
      %v735 = vpop.permute.xlu0 %734
      %738 = vset.pattern.permute.xlu0 0
      %739 = vperm.xlu0 %738, %v444
      %v740 = vpop.permute.xlu0 %739
      %743 = vset.pattern.permute.xlu0 0
      %744 = vperm.xlu0 %743, %v445
      %v745 = vpop.permute.xlu0 %744
      %v747 = vsel %vm688, %v710, %v699
      %v748 = vsel %vm688, %v715, %v700
      %v749 = vsel %vm688, %v720, %v701
      %v750 = vsel %vm688, %v725, %v702
      %v751 = vsel %vm688, %v730, %v703
      %v752 = vsel %vm688, %v735, %v704
      %v753 = vsel %vm688, %v740, %v705
      %v754 = vsel %vm688, %v745, %v706
      %755 = vst [vmem:[%s295] sm:$0xff] %v747
      %756 = vst [vmem:[%s295 + $0x8] sm:$0xff] %v748
      %757 = vst [vmem:[%s295 + $0x10] sm:$0xff] %v749
      %758 = vst [vmem:[%s295 + $0x18] sm:$0xff] %v750
      %759 = vst [vmem:[%s295 + $0x20] sm:$0xff] %v751
      %760 = vst [vmem:[%s295 + $0x28] sm:$0xff] %v752
      %761 = vst [vmem:[%s295 + $0x30] sm:$0xff] %v753
      %762 = vst [vmem:[%s295 + $0x38] sm:$0xff] %v754
      %s763 = smul.u32 8, %s21
      %p764 = scmp.lt.s32.totalorder %s20, 1
      %s765 = scalar_select %p764, %s20, 1
      %p766 = scmp.lt.s32.totalorder %s763, 7
      %s767 = scalar_select %p766, %s763, 7
      %s768 = smul.addr %s765, 8
      %s769 = sadd.s32 %s767, %s768
      %s770 = smul.addr %s769, 4
      %s771 = scalar_lea.vmem %s3, %s770
      %s772 = smul.u32 8, %s21
      %p773 = scmp.lt.s32.totalorder %s20, 1
      %s774 = scalar_select %p773, %s20, 1
      %p775 = scmp.lt.s32.totalorder %s772, 7
      %s776 = scalar_select %p775, %s772, 7
      %s777 = smul.addr %s774, 8
      %s778 = sadd.s32 %s776, %s777
      %s779 = smul.addr %s778, 8
      %s780 = scalar_lea.vmem %s4, %s779
      // Predicated region
      $region33: #{wgan_unet_down_forward.2} parent=31 // pred_check
        %p781 = pneg %p125
      $region34: #{wgan_unet_down_forward.2} parent=31 // pred_check_branch
        %783 = sbr.rel (%p781) target = $region36
      $region35: #{wgan_unet_down_forward.2} parent=31 // pred_region
        %s784 = smul.u32 8, %s21
      $region36: #{wgan_unet_down_forward.2} parent=31 // pred_fallthru
        _
      // Predicated region
      $region37: #{wgan_unet_down_forward.2} parent=31 // pred_check
        %p785 = pneg %p153
      $region38: #{wgan_unet_down_forward.2} parent=31 // pred_check_branch
        %787 = sbr.rel (%p785) target = $region40
      $region39: #{wgan_unet_down_forward.2} parent=31 // pred_region
        %s788 = smul.u32 8, %s21
      $region40: #{wgan_unet_down_forward.2} parent=31 // pred_fallthru
        _
    $region32: #{wgan_unet_down_forward.2} parent=5 // pred_fallthru
      _
    %p789 = scmp.le.s32.totalorder 2, %s11
    // Predicated region
    $region41: #{wgan_unet_down_forward.2} parent=5 // pred_check
      %p790 = pneg %p789
    $region42: #{wgan_unet_down_forward.2} parent=5 // pred_check_branch
      %792 = sbr.rel (%p790) target = $region44
    $region43: #{wgan_unet_down_forward.2} parent=5 // pred_region
      %s793 = ssub.s32 %s11, 2
      // Predicated region
      $region45: #{wgan_unet_down_forward.2} parent=43 // pred_check
        %p794 = pneg %p131
      $region46: #{wgan_unet_down_forward.2} parent=43 // pred_check_branch
        %796 = sbr.rel (%p794) target = $region48
      $region47: #{wgan_unet_down_forward.2} parent=43 // pred_region
        %s797 = smul.u32 8, %s23
        %p798 = scmp.lt.s32.totalorder %s22, 1
        %s799 = scalar_select %p798, %s22, 1
        %p800 = scmp.lt.s32.totalorder %s797, 7
        %s801 = scalar_select %p800, %s797, 7
        %s802 = smul.addr %s799, 8
        %s803 = sadd.s32 %s801, %s802
        %s804 = smul.addr %s803, 4
        %s805 = scalar_lea.vmem %s3, %s804
      $region48: #{wgan_unet_down_forward.2} parent=43 // pred_fallthru
        _
      // Predicated region
      $region49: #{wgan_unet_down_forward.2} parent=43 // pred_check
        %p806 = pneg %p159
      $region50: #{wgan_unet_down_forward.2} parent=43 // pred_check_branch
        %808 = sbr.rel (%p806) target = $region52
      $region51: #{wgan_unet_down_forward.2} parent=43 // pred_region
        %s809 = smul.u32 8, %s23
        %p810 = scmp.lt.s32.totalorder %s22, 1
        %s811 = scalar_select %p810, %s22, 1
        %p812 = scmp.lt.s32.totalorder %s809, 7
        %s813 = scalar_select %p812, %s809, 7
        %s814 = smul.addr %s811, 8
        %s815 = sadd.s32 %s813, %s814
        %s816 = smul.addr %s815, 8
        %s817 = scalar_lea.vmem %s4, %s816
      $region52: #{wgan_unet_down_forward.2} parent=43 // pred_fallthru
        _
    $region44: #{wgan_unet_down_forward.2} parent=5 // pred_fallthru
      _
  $region6: #{wgan_unet_down_forward.2} parent=0 // loop_footer
    %s15 = sadd.s32 1, %s11
  $region7: #{wgan_unet_down_forward.2} parent=0 // loop_footer_branch
    %10 = sbr.rel target = $region3
  $region8: #{wgan_unet_down_forward.2} parent=0 // loop_exit
    _

</llo_original>
